<compile_context>
chip_gen: v5e
topology: v5e:2x2
jax: 0.10.0
libtpu: 0.0.40
codegen_flags: <defaults>
</compile_context>

<pallas_src>
import functools

import jax
import jax.numpy as jnp
import numpy as np
from jax.experimental import pallas as pl
from jax.experimental.pallas import tpu as pltpu


def _round_up(x, m):
    return (x + m - 1) // m * m


def _occlu_kernel(bs_ref, r_ref, out_ref, *, min_disp, max_disp, pad, w_out):
    """One (batch, H-tile) grid step.

    bs_ref : (N,) int32 scalar-prefetch (SMEM) -- sign of bsline per image.
    r_ref  : (TH, Wr) f32 -- column-edge-padded vertical 3-row sum * (1/3).
    out_ref: (TH, Wo) f32 -- lane-dense output tile (Wo = round_up(W, 128)).
    """
    b = pl.program_id(0)
    s = bs_ref[b]

    def min_chain(sign):
        # sign=+1 -> 'l' branch (bsline < 0); sign=-1 -> 'r' branch
        # (bsline > 0; PyTorch's width flip folded into mirrored offsets).
        s2 = (r_ref[:, pl.ds(pad, w_out)]
              + r_ref[:, pl.ds(pad + sign, w_out)]) * 0.5
        m = None
        for i in range(min_disp, max_disp):
            bias = float(i + 1 + min_disp)
            t = r_ref[:, pl.ds(pad + sign * (i + 2), w_out)]
            a = jnp.abs((s2 + bias) - t)
            m = a if m is None else jnp.minimum(m, a)
        # m is an abs-min, already >= 0: only the upper clamp is needed.
        out_ref[...] = jnp.minimum(m, 1.0).astype(out_ref.dtype)

    @pl.when(s == 0)
    def _():
        out_ref[...] = jnp.zeros_like(out_ref)

    @pl.when(s < 0)
    def _():
        min_chain(+1)

    @pl.when(s > 0)
    def _():
        min_chain(-1)


def _pick_tile_h(H, Wr, Wo, tile_h):
    if tile_h is not None:
        assert H % tile_h == 0 and (tile_h % 8 == 0 or tile_h == H)
        return tile_h
    # Keep the double-buffered (input + output) block footprint around 16 MiB;
    # cap TH at 512 (per-grid-step overhead vs. VMEM trade-off).
    bytes_per_row = (Wr + Wo) * 4 * 2
    cap = min(512, max(8, (16 * 1024 * 1024 // bytes_per_row) // 8 * 8))
    if H <= cap:
        return H
    best = None
    for th in range(8, cap + 1, 8):
        if H % th == 0:
            best = th
    # Fall back to full H (legal: block dim == full array dim).
    return best if best is not None else H


def self_occlu_mask(dispmap, bsline, *, min_disp=0, max_disp=21, tile_h=None):
    """Pallas implementation of SelfOccluMask.forward.

    dispmap: (N, 1, H, W) float (NCHW), bsline: (N,) float.
    Returns (N, 1, H, W) in dispmap's dtype.
    """
    # Index arithmetic (taps at pad +/- (i+2)) requires a non-negative minDisp.
    assert min_disp >= 0 and max_disp > min_disp
    N, C, H, W = dispmap.shape
    assert C == 1
    pad = max_disp + 1

    Wo = _round_up(W, 128)             # lane-dense output width
    Wr = _round_up(Wo + 2 * pad, 128)  # row-sum width (all tap windows in range)

    TH = _pick_tile_h(H, Wr, Wo, tile_h)
    nT = H // TH

    d = dispmap[:, 0].astype(jnp.float32)  # (N, H, W)
    # Single fused host pass: replication pad (1 row top/bottom; `pad` columns
    # left, the remainder right) + vertical 3-row sum, prescaled by 1/3.  The
    # 'r' branch's width flip is folded into mirrored column offsets in-kernel,
    # which is why BOTH sides carry the column edge pad.
    p = jnp.pad(d, ((0, 0), (1, 1), (pad, Wr - W - pad)), mode="edge")
    r = (p[:, 0:H, :] + p[:, 1:H + 1, :] + p[:, 2:H + 2, :]) * (1.0 / 3.0)

    bsign = jnp.sign(bsline).astype(jnp.int32)  # (N,)

    kernel = functools.partial(_occlu_kernel, min_disp=min_disp,
                               max_disp=max_disp, pad=pad, w_out=Wo)

    out = pl.pallas_call(
        kernel,
        out_shape=jax.ShapeDtypeStruct((N, H, Wo), jnp.float32),
        grid_spec=pltpu.PrefetchScalarGridSpec(
            num_scalar_prefetch=1,
            grid=(N, nT),
            in_specs=[
                # Leading batch dim squeezed; kernel sees (TH, Wr).  No halo:
                # the vertical sum already consumed the row neighbourhood.
                pl.BlockSpec((None, TH, Wr), lambda b, t, bs: (b, t, 0)),
            ],
            out_specs=pl.BlockSpec((None, TH, Wo), lambda b, t, bs: (b, t, 0)),
        ),
        compiler_params=pltpu.CompilerParams(
            dimension_semantics=("parallel", "parallel"),
        ),
    )(bsign, r)

    # Drop the lane-alignment columns (no-op when W % 128 == 0).
    return out[:, None, :, :W].astype(dispmap.dtype)


def _reference(dispmap, bsline, *, min_disp=0, max_disp=21):
    """Pure-JAX port of the PyTorch module, for verification."""
    nd = max_disp - min_disp
    w = np.zeros((nd, 1, 3, max_disp + 2), np.float32)
    for i in range(min_disp, max_disp):
        w[i - min_disp, 0, :, 0:2] = 1.0 / 6.0
        w[i - min_disp, 0, :, i + 2:i + 3] = -1.0 / 3.0
    bias = np.arange(min_disp, max_disp, dtype=np.float32) + 1 + min_disp
    w = jnp.asarray(w)
    bias = jnp.asarray(bias)

    def compute(dm, direction):
        if direction == "r":
            dm = dm[..., ::-1]
        p = jnp.pad(dm, ((0, 0), (0, 0), (1, 1), (0, max_disp + 1)), mode="edge")
        out = jax.lax.conv_general_dilated(
            p, w, window_strides=(1, 1), padding="VALID",
            dimension_numbers=("NCHW", "OIHW", "NCHW"),
        ) + bias[None, :, None, None]
        out = jnp.abs(out)
        m = jnp.min(out, axis=1, keepdims=True)
        m = jnp.clip(m, 0.0, 1.0)
        if direction == "r":
            m = m[..., ::-1]
        return m

    maskl = compute(dispmap, "l")
    maskr = compute(dispmap, "r")
    lind = (bsline < 0)[:, None, None, None]
    rind = (bsline > 0)[:, None, None, None]
    mask = jnp.zeros_like(dispmap)
    mask = jnp.where(lind, maskl, mask)
    mask = jnp.where(rind, maskr, mask)
    return mask


if __name__ == "__main__":
    key = jax.random.PRNGKey(0)
    N, H, W = 3, 16, 16
    dispmap = jax.random.uniform(key, (N, 1, H, W), jnp.float32) * 8.0
    # One 'l' sample (bsline<0), one inactive (==0), one 'r' sample (>0):
    # exercises all three pl.when paths.
    bsline = jnp.array([-0.54, 0.0, 0.54], jnp.float32)

    ref = jax.block_until_ready(_reference(dispmap, bsline))

    # Whole-image H tile (auto pick) and explicit H tiling (TH=8, no halo).
    out_auto = jax.block_until_ready(self_occlu_mask(dispmap, bsline))
    np.testing.assert_allclose(np.asarray(out_auto), np.asarray(ref),
                               atol=1e-4, rtol=1e-4)

    out_tiled = jax.block_until_ready(self_occlu_mask(dispmap, bsline, tile_h=8))
    np.testing.assert_allclose(np.asarray(out_tiled), np.asarray(ref),
                               atol=1e-4, rtol=1e-4)

    print("KERNEL_OK")
</pallas_src>

<mosaic_0001>
module attributes {stable_mosaic.version = 11 : i64} {
  func.func @_occlu_kernel(%arg0: i32, %arg1: i32, %arg2: memref<3xi32, #tpu.memory_space<smem>>, %arg3: memref<1x16x256xf32, #tpu.memory_space<vmem>>, %arg4: memref<1x16x128xf32, #tpu.memory_space<vmem>>) attributes {dimension_semantics = [#tpu.dimension_semantics<parallel>, #tpu.dimension_semantics<parallel>], iteration_bounds = array<i64: 3, 1>, scalar_prefetch = 1 : i64, scratch_operands = 0 : i64, tpu.core_type = #tpu.core_type<tc>, window_params = [{transform_indices = @transform_0, window_bounds = array<i64: 1, 16, 256>}, {transform_indices = @transform_1, window_bounds = array<i64: 1, 16, 128>}]} {
    %0 = arith.index_cast %arg0 : i32 to index
    %1 = memref.load %arg2[%0] : memref<3xi32, #tpu.memory_space<smem>>
    %c0_i32 = arith.constant 0 : i32
    %2 = arith.cmpi eq, %1, %c0_i32 : i32
    %3 = arith.extui %2 : i1 to i32
    %c0_i32_0 = arith.constant 0 : i32
    %4 = arith.cmpi ne, %3, %c0_i32_0 : i32
    scf.if %4 {
      %cst = arith.constant 0.000000e+00 : f32
      %11 = vector.broadcast %cst : f32 to vector<16x128xf32>
      %c0 = arith.constant 0 : index
      %c0_5 = arith.constant 0 : index
      %c0_6 = arith.constant 0 : index
      %12 = vector.load %arg4[%c0, %c0_5, %c0_6] : memref<1x16x128xf32, #tpu.memory_space<vmem>>, vector<1x16x128xf32>
      %13 = vector.shape_cast %12 : vector<1x16x128xf32> to vector<16x128xf32>
      %14 = vector.shape_cast %11 : vector<16x128xf32> to vector<1x16x128xf32>
      tpu.vector_store %arg4[%c0, %c0_5, %c0_6], %14 {strides = array<i32>} : memref<1x16x128xf32, #tpu.memory_space<vmem>>, vector<1x16x128xf32>,
    } else {
    }
    %c0_i32_1 = arith.constant 0 : i32
    %5 = arith.cmpi slt, %1, %c0_i32_1 : i32
    %6 = arith.extui %5 : i1 to i32
    %c0_i32_2 = arith.constant 0 : i32
    %7 = arith.cmpi ne, %6, %c0_i32_2 : i32
    scf.if %7 {
      %c0 = arith.constant 0 : index
      %c0_5 = arith.constant 0 : index
      %c22 = arith.constant 22 : index
      %11 = vector.load %arg3[%c0, %c0_5, %c22] : memref<1x16x256xf32, #tpu.memory_space<vmem>>, vector<1x16x128xf32>
      %12 = vector.shape_cast %11 : vector<1x16x128xf32> to vector<16x128xf32>
      %c0_6 = arith.constant 0 : index
      %c0_7 = arith.constant 0 : index
      %c23 = arith.constant 23 : index
      %13 = vector.load %arg3[%c0_6, %c0_7, %c23] : memref<1x16x256xf32, #tpu.memory_space<vmem>>, vector<1x16x128xf32>
      %14 = vector.shape_cast %13 : vector<1x16x128xf32> to vector<16x128xf32>
      %15 = arith.addf %12, %14 : vector<16x128xf32>
      %cst = arith.constant 5.000000e-01 : f32
      %16 = vector.broadcast %cst : f32 to vector<16x128xf32>
      %17 = arith.mulf %15, %16 : vector<16x128xf32>
      %c0_8 = arith.constant 0 : index
      %c0_9 = arith.constant 0 : index
      %c24 = arith.constant 24 : index
      %18 = vector.load %arg3[%c0_8, %c0_9, %c24] : memref<1x16x256xf32, #tpu.memory_space<vmem>>, vector<1x16x128xf32>
      %19 = vector.shape_cast %18 : vector<1x16x128xf32> to vector<16x128xf32>
      %cst_10 = arith.constant 1.000000e+00 : f32
      %20 = vector.broadcast %cst_10 : f32 to vector<16x128xf32>
      %21 = arith.addf %17, %20 : vector<16x128xf32>
      %22 = arith.subf %21, %19 : vector<16x128xf32>
      %23 = math.absf %22 : vector<16x128xf32>
      %c0_11 = arith.constant 0 : index
      %c0_12 = arith.constant 0 : index
      %c25 = arith.constant 25 : index
      %24 = vector.load %arg3[%c0_11, %c0_12, %c25] : memref<1x16x256xf32, #tpu.memory_space<vmem>>, vector<1x16x128xf32>
      %25 = vector.shape_cast %24 : vector<1x16x128xf32> to vector<16x128xf32>
      %cst_13 = arith.constant 2.000000e+00 : f32
      %26 = vector.broadcast %cst_13 : f32 to vector<16x128xf32>
      %27 = arith.addf %17, %26 : vector<16x128xf32>
      %28 = arith.subf %27, %25 : vector<16x128xf32>
      %29 = math.absf %28 : vector<16x128xf32>
      %30 = arith.minimumf %23, %29 : vector<16x128xf32>
      %c0_14 = arith.constant 0 : index
      %c0_15 = arith.constant 0 : index
      %c26 = arith.constant 26 : index
      %31 = vector.load %arg3[%c0_14, %c0_15, %c26] : memref<1x16x256xf32, #tpu.memory_space<vmem>>, vector<1x16x128xf32>
      %32 = vector.shape_cast %31 : vector<1x16x128xf32> to vector<16x128xf32>
      %cst_16 = arith.constant 3.000000e+00 : f32
      %33 = vector.broadcast %cst_16 : f32 to vector<16x128xf32>
      %34 = arith.addf %17, %33 : vector<16x128xf32>
      %35 = arith.subf %34, %32 : vector<16x128xf32>
      %36 = math.absf %35 : vector<16x128xf32>
      %37 = arith.minimumf %30, %36 : vector<16x128xf32>
      %c0_17 = arith.constant 0 : index
      %c0_18 = arith.constant 0 : index
      %c27 = arith.constant 27 : index
      %38 = vector.load %arg3[%c0_17, %c0_18, %c27] : memref<1x16x256xf32, #tpu.memory_space<vmem>>, vector<1x16x128xf32>
      %39 = vector.shape_cast %38 : vector<1x16x128xf32> to vector<16x128xf32>
      %cst_19 = arith.constant 4.000000e+00 : f32
      %40 = vector.broadcast %cst_19 : f32 to vector<16x128xf32>
      %41 = arith.addf %17, %40 : vector<16x128xf32>
      %42 = arith.subf %41, %39 : vector<16x128xf32>
      %43 = math.absf %42 : vector<16x128xf32>
      %44 = arith.minimumf %37, %43 : vector<16x128xf32>
      %c0_20 = arith.constant 0 : index
      %c0_21 = arith.constant 0 : index
      %c28 = arith.constant 28 : index
      %45 = vector.load %arg3[%c0_20, %c0_21, %c28] : memref<1x16x256xf32, #tpu.memory_space<vmem>>, vector<1x16x128xf32>
      %46 = vector.shape_cast %45 : vector<1x16x128xf32> to vector<16x128xf32>
      %cst_22 = arith.constant 5.000000e+00 : f32
      %47 = vector.broadcast %cst_22 : f32 to vector<16x128xf32>
      %48 = arith.addf %17, %47 : vector<16x128xf32>
      %49 = arith.subf %48, %46 : vector<16x128xf32>
      %50 = math.absf %49 : vector<16x128xf32>
      %51 = arith.minimumf %44, %50 : vector<16x128xf32>
      %c0_23 = arith.constant 0 : index
      %c0_24 = arith.constant 0 : index
      %c29 = arith.constant 29 : index
      %52 = vector.load %arg3[%c0_23, %c0_24, %c29] : memref<1x16x256xf32, #tpu.memory_space<vmem>>, vector<1x16x128xf32>
      %53 = vector.shape_cast %52 : vector<1x16x128xf32> to vector<16x128xf32>
      %cst_25 = arith.constant 6.000000e+00 : f32
      %54 = vector.broadcast %cst_25 : f32 to vector<16x128xf32>
      %55 = arith.addf %17, %54 : vector<16x128xf32>
      %56 = arith.subf %55, %53 : vector<16x128xf32>
      %57 = math.absf %56 : vector<16x128xf32>
      %58 = arith.minimumf %51, %57 : vector<16x128xf32>
      %c0_26 = arith.constant 0 : index
      %c0_27 = arith.constant 0 : index
      %c30 = arith.constant 30 : index
      %59 = vector.load %arg3[%c0_26, %c0_27, %c30] : memref<1x16x256xf32, #tpu.memory_space<vmem>>, vector<1x16x128xf32>
      %60 = vector.shape_cast %59 : vector<1x16x128xf32> to vector<16x128xf32>
      %cst_28 = arith.constant 7.000000e+00 : f32
      %61 = vector.broadcast %cst_28 : f32 to vector<16x128xf32>
      %62 = arith.addf %17, %61 : vector<16x128xf32>
      %63 = arith.subf %62, %60 : vector<16x128xf32>
      %64 = math.absf %63 : vector<16x128xf32>
      %65 = arith.minimumf %58, %64 : vector<16x128xf32>
      %c0_29 = arith.constant 0 : index
      %c0_30 = arith.constant 0 : index
      %c31 = arith.constant 31 : index
      %66 = vector.load %arg3[%c0_29, %c0_30, %c31] : memref<1x16x256xf32, #tpu.memory_space<vmem>>, vector<1x16x128xf32>
      %67 = vector.shape_cast %66 : vector<1x16x128xf32> to vector<16x128xf32>
      %cst_31 = arith.constant 8.000000e+00 : f32
      %68 = vector.broadcast %cst_31 : f32 to vector<16x128xf32>
      %69 = arith.addf %17, %68 : vector<16x128xf32>
      %70 = arith.subf %69, %67 : vector<16x128xf32>
      %71 = math.absf %70 : vector<16x128xf32>
      %72 = arith.minimumf %65, %71 : vector<16x128xf32>
      %c0_32 = arith.constant 0 : index
      %c0_33 = arith.constant 0 : index
      %c32 = arith.constant 32 : index
      %73 = vector.load %arg3[%c0_32, %c0_33, %c32] : memref<1x16x256xf32, #tpu.memory_space<vmem>>, vector<1x16x128xf32>
      %74 = vector.shape_cast %73 : vector<1x16x128xf32> to vector<16x128xf32>
      %cst_34 = arith.constant 9.000000e+00 : f32
      %75 = vector.broadcast %cst_34 : f32 to vector<16x128xf32>
      %76 = arith.addf %17, %75 : vector<16x128xf32>
      %77 = arith.subf %76, %74 : vector<16x128xf32>
      %78 = math.absf %77 : vector<16x128xf32>
      %79 = arith.minimumf %72, %78 : vector<16x128xf32>
      %c0_35 = arith.constant 0 : index
      %c0_36 = arith.constant 0 : index
      %c33 = arith.constant 33 : index
      %80 = vector.load %arg3[%c0_35, %c0_36, %c33] : memref<1x16x256xf32, #tpu.memory_space<vmem>>, vector<1x16x128xf32>
      %81 = vector.shape_cast %80 : vector<1x16x128xf32> to vector<16x128xf32>
      %cst_37 = arith.constant 1.000000e+01 : f32
      %82 = vector.broadcast %cst_37 : f32 to vector<16x128xf32>
      %83 = arith.addf %17, %82 : vector<16x128xf32>
      %84 = arith.subf %83, %81 : vector<16x128xf32>
      %85 = math.absf %84 : vector<16x128xf32>
      %86 = arith.minimumf %79, %85 : vector<16x128xf32>
      %c0_38 = arith.constant 0 : index
      %c0_39 = arith.constant 0 : index
      %c34 = arith.constant 34 : index
      %87 = vector.load %arg3[%c0_38, %c0_39, %c34] : memref<1x16x256xf32, #tpu.memory_space<vmem>>, vector<1x16x128xf32>
      %88 = vector.shape_cast %87 : vector<1x16x128xf32> to vector<16x128xf32>
      %cst_40 = arith.constant 1.100000e+01 : f32
      %89 = vector.broadcast %cst_40 : f32 to vector<16x128xf32>
      %90 = arith.addf %17, %89 : vector<16x128xf32>
      %91 = arith.subf %90, %88 : vector<16x128xf32>
      %92 = math.absf %91 : vector<16x128xf32>
      %93 = arith.minimumf %86, %92 : vector<16x128xf32>
      %c0_41 = arith.constant 0 : index
      %c0_42 = arith.constant 0 : index
      %c35 = arith.constant 35 : index
      %94 = vector.load %arg3[%c0_41, %c0_42, %c35] : memref<1x16x256xf32, #tpu.memory_space<vmem>>, vector<1x16x128xf32>
      %95 = vector.shape_cast %94 : vector<1x16x128xf32> to vector<16x128xf32>
      %cst_43 = arith.constant 1.200000e+01 : f32
      %96 = vector.broadcast %cst_43 : f32 to vector<16x128xf32>
      %97 = arith.addf %17, %96 : vector<16x128xf32>
      %98 = arith.subf %97, %95 : vector<16x128xf32>
      %99 = math.absf %98 : vector<16x128xf32>
      %100 = arith.minimumf %93, %99 : vector<16x128xf32>
      %c0_44 = arith.constant 0 : index
      %c0_45 = arith.constant 0 : index
      %c36 = arith.constant 36 : index
      %101 = vector.load %arg3[%c0_44, %c0_45, %c36] : memref<1x16x256xf32, #tpu.memory_space<vmem>>, vector<1x16x128xf32>
      %102 = vector.shape_cast %101 : vector<1x16x128xf32> to vector<16x128xf32>
      %cst_46 = arith.constant 1.300000e+01 : f32
      %103 = vector.broadcast %cst_46 : f32 to vector<16x128xf32>
      %104 = arith.addf %17, %103 : vector<16x128xf32>
      %105 = arith.subf %104, %102 : vector<16x128xf32>
      %106 = math.absf %105 : vector<16x128xf32>
      %107 = arith.minimumf %100, %106 : vector<16x128xf32>
      %c0_47 = arith.constant 0 : index
      %c0_48 = arith.constant 0 : index
      %c37 = arith.constant 37 : index
      %108 = vector.load %arg3[%c0_47, %c0_48, %c37] : memref<1x16x256xf32, #tpu.memory_space<vmem>>, vector<1x16x128xf32>
      %109 = vector.shape_cast %108 : vector<1x16x128xf32> to vector<16x128xf32>
      %cst_49 = arith.constant 1.400000e+01 : f32
      %110 = vector.broadcast %cst_49 : f32 to vector<16x128xf32>
      %111 = arith.addf %17, %110 : vector<16x128xf32>
      %112 = arith.subf %111, %109 : vector<16x128xf32>
      %113 = math.absf %112 : vector<16x128xf32>
      %114 = arith.minimumf %107, %113 : vector<16x128xf32>
      %c0_50 = arith.constant 0 : index
      %c0_51 = arith.constant 0 : index
      %c38 = arith.constant 38 : index
      %115 = vector.load %arg3[%c0_50, %c0_51, %c38] : memref<1x16x256xf32, #tpu.memory_space<vmem>>, vector<1x16x128xf32>
      %116 = vector.shape_cast %115 : vector<1x16x128xf32> to vector<16x128xf32>
      %cst_52 = arith.constant 1.500000e+01 : f32
      %117 = vector.broadcast %cst_52 : f32 to vector<16x128xf32>
      %118 = arith.addf %17, %117 : vector<16x128xf32>
      %119 = arith.subf %118, %116 : vector<16x128xf32>
      %120 = math.absf %119 : vector<16x128xf32>
      %121 = arith.minimumf %114, %120 : vector<16x128xf32>
      %c0_53 = arith.constant 0 : index
      %c0_54 = arith.constant 0 : index
      %c39 = arith.constant 39 : index
      %122 = vector.load %arg3[%c0_53, %c0_54, %c39] : memref<1x16x256xf32, #tpu.memory_space<vmem>>, vector<1x16x128xf32>
      %123 = vector.shape_cast %122 : vector<1x16x128xf32> to vector<16x128xf32>
      %cst_55 = arith.constant 1.600000e+01 : f32
      %124 = vector.broadcast %cst_55 : f32 to vector<16x128xf32>
      %125 = arith.addf %17, %124 : vector<16x128xf32>
      %126 = arith.subf %125, %123 : vector<16x128xf32>
      %127 = math.absf %126 : vector<16x128xf32>
      %128 = arith.minimumf %121, %127 : vector<16x128xf32>
      %c0_56 = arith.constant 0 : index
      %c0_57 = arith.constant 0 : index
      %c40 = arith.constant 40 : index
      %129 = vector.load %arg3[%c0_56, %c0_57, %c40] : memref<1x16x256xf32, #tpu.memory_space<vmem>>, vector<1x16x128xf32>
      %130 = vector.shape_cast %129 : vector<1x16x128xf32> to vector<16x128xf32>
      %cst_58 = arith.constant 1.700000e+01 : f32
      %131 = vector.broadcast %cst_58 : f32 to vector<16x128xf32>
      %132 = arith.addf %17, %131 : vector<16x128xf32>
      %133 = arith.subf %132, %130 : vector<16x128xf32>
      %134 = math.absf %133 : vector<16x128xf32>
      %135 = arith.minimumf %128, %134 : vector<16x128xf32>
      %c0_59 = arith.constant 0 : index
      %c0_60 = arith.constant 0 : index
      %c41 = arith.constant 41 : index
      %136 = vector.load %arg3[%c0_59, %c0_60, %c41] : memref<1x16x256xf32, #tpu.memory_space<vmem>>, vector<1x16x128xf32>
      %137 = vector.shape_cast %136 : vector<1x16x128xf32> to vector<16x128xf32>
      %cst_61 = arith.constant 1.800000e+01 : f32
      %138 = vector.broadcast %cst_61 : f32 to vector<16x128xf32>
      %139 = arith.addf %17, %138 : vector<16x128xf32>
      %140 = arith.subf %139, %137 : vector<16x128xf32>
      %141 = math.absf %140 : vector<16x128xf32>
      %142 = arith.minimumf %135, %141 : vector<16x128xf32>
      %c0_62 = arith.constant 0 : index
      %c0_63 = arith.constant 0 : index
      %c42 = arith.constant 42 : index
      %143 = vector.load %arg3[%c0_62, %c0_63, %c42] : memref<1x16x256xf32, #tpu.memory_space<vmem>>, vector<1x16x128xf32>
      %144 = vector.shape_cast %143 : vector<1x16x128xf32> to vector<16x128xf32>
      %cst_64 = arith.constant 1.900000e+01 : f32
      %145 = vector.broadcast %cst_64 : f32 to vector<16x128xf32>
      %146 = arith.addf %17, %145 : vector<16x128xf32>
      %147 = arith.subf %146, %144 : vector<16x128xf32>
      %148 = math.absf %147 : vector<16x128xf32>
      %149 = arith.minimumf %142, %148 : vector<16x128xf32>
      %c0_65 = arith.constant 0 : index
      %c0_66 = arith.constant 0 : index
      %c43 = arith.constant 43 : index
      %150 = vector.load %arg3[%c0_65, %c0_66, %c43] : memref<1x16x256xf32, #tpu.memory_space<vmem>>, vector<1x16x128xf32>
      %151 = vector.shape_cast %150 : vector<1x16x128xf32> to vector<16x128xf32>
      %cst_67 = arith.constant 2.000000e+01 : f32
      %152 = vector.broadcast %cst_67 : f32 to vector<16x128xf32>
      %153 = arith.addf %17, %152 : vector<16x128xf32>
      %154 = arith.subf %153, %151 : vector<16x128xf32>
      %155 = math.absf %154 : vector<16x128xf32>
      %156 = arith.minimumf %149, %155 : vector<16x128xf32>
      %c0_68 = arith.constant 0 : index
      %c0_69 = arith.constant 0 : index
      %c44 = arith.constant 44 : index
      %157 = vector.load %arg3[%c0_68, %c0_69, %c44] : memref<1x16x256xf32, #tpu.memory_space<vmem>>, vector<1x16x128xf32>
      %158 = vector.shape_cast %157 : vector<1x16x128xf32> to vector<16x128xf32>
      %cst_70 = arith.constant 2.100000e+01 : f32
      %159 = vector.broadcast %cst_70 : f32 to vector<16x128xf32>
      %160 = arith.addf %17, %159 : vector<16x128xf32>
      %161 = arith.subf %160, %158 : vector<16x128xf32>
      %162 = math.absf %161 : vector<16x128xf32>
      %163 = arith.minimumf %156, %162 : vector<16x128xf32>
      %cst_71 = arith.constant 1.000000e+00 : f32
      %164 = vector.broadcast %cst_71 : f32 to vector<16x128xf32>
      %165 = arith.minimumf %163, %164 : vector<16x128xf32>
      %c0_72 = arith.constant 0 : index
      %c0_73 = arith.constant 0 : index
      %c0_74 = arith.constant 0 : index
      %166 = vector.load %arg4[%c0_72, %c0_73, %c0_74] : memref<1x16x128xf32, #tpu.memory_space<vmem>>, vector<1x16x128xf32>
      %167 = vector.shape_cast %166 : vector<1x16x128xf32> to vector<16x128xf32>
      %168 = vector.shape_cast %165 : vector<16x128xf32> to vector<1x16x128xf32>
      tpu.vector_store %arg4[%c0_72, %c0_73, %c0_74], %168 {strides = array<i32>} : memref<1x16x128xf32, #tpu.memory_space<vmem>>, vector<1x16x128xf32>,
    } else {
    }
    %c0_i32_3 = arith.constant 0 : i32
    %8 = arith.cmpi sgt, %1, %c0_i32_3 : i32
    %9 = arith.extui %8 : i1 to i32
    %c0_i32_4 = arith.constant 0 : i32
    %10 = arith.cmpi ne, %9, %c0_i32_4 : i32
    scf.if %10 {
      %c0 = arith.constant 0 : index
      %c0_5 = arith.constant 0 : index
      %c22 = arith.constant 22 : index
      %11 = vector.load %arg3[%c0, %c0_5, %c22] : memref<1x16x256xf32, #tpu.memory_space<vmem>>, vector<1x16x128xf32>
      %12 = vector.shape_cast %11 : vector<1x16x128xf32> to vector<16x128xf32>
      %c0_6 = arith.constant 0 : index
      %c0_7 = arith.constant 0 : index
      %c21 = arith.constant 21 : index
      %13 = vector.load %arg3[%c0_6, %c0_7, %c21] : memref<1x16x256xf32, #tpu.memory_space<vmem>>, vector<1x16x128xf32>
      %14 = vector.shape_cast %13 : vector<1x16x128xf32> to vector<16x128xf32>
      %15 = arith.addf %12, %14 : vector<16x128xf32>
      %cst = arith.constant 5.000000e-01 : f32
      %16 = vector.broadcast %cst : f32 to vector<16x128xf32>
      %17 = arith.mulf %15, %16 : vector<16x128xf32>
      %c0_8 = arith.constant 0 : index
      %c0_9 = arith.constant 0 : index
      %c20 = arith.constant 20 : index
      %18 = vector.load %arg3[%c0_8, %c0_9, %c20] : memref<1x16x256xf32, #tpu.memory_space<vmem>>, vector<1x16x128xf32>
      %19 = vector.shape_cast %18 : vector<1x16x128xf32> to vector<16x128xf32>
      %cst_10 = arith.constant 1.000000e+00 : f32
      %20 = vector.broadcast %cst_10 : f32 to vector<16x128xf32>
      %21 = arith.addf %17, %20 : vector<16x128xf32>
      %22 = arith.subf %21, %19 : vector<16x128xf32>
      %23 = math.absf %22 : vector<16x128xf32>
      %c0_11 = arith.constant 0 : index
      %c0_12 = arith.constant 0 : index
      %c19 = arith.constant 19 : index
      %24 = vector.load %arg3[%c0_11, %c0_12, %c19] : memref<1x16x256xf32, #tpu.memory_space<vmem>>, vector<1x16x128xf32>
      %25 = vector.shape_cast %24 : vector<1x16x128xf32> to vector<16x128xf32>
      %cst_13 = arith.constant 2.000000e+00 : f32
      %26 = vector.broadcast %cst_13 : f32 to vector<16x128xf32>
      %27 = arith.addf %17, %26 : vector<16x128xf32>
      %28 = arith.subf %27, %25 : vector<16x128xf32>
      %29 = math.absf %28 : vector<16x128xf32>
      %30 = arith.minimumf %23, %29 : vector<16x128xf32>
      %c0_14 = arith.constant 0 : index
      %c0_15 = arith.constant 0 : index
      %c18 = arith.constant 18 : index
      %31 = vector.load %arg3[%c0_14, %c0_15, %c18] : memref<1x16x256xf32, #tpu.memory_space<vmem>>, vector<1x16x128xf32>
      %32 = vector.shape_cast %31 : vector<1x16x128xf32> to vector<16x128xf32>
      %cst_16 = arith.constant 3.000000e+00 : f32
      %33 = vector.broadcast %cst_16 : f32 to vector<16x128xf32>
      %34 = arith.addf %17, %33 : vector<16x128xf32>
      %35 = arith.subf %34, %32 : vector<16x128xf32>
      %36 = math.absf %35 : vector<16x128xf32>
      %37 = arith.minimumf %30, %36 : vector<16x128xf32>
      %c0_17 = arith.constant 0 : index
      %c0_18 = arith.constant 0 : index
      %c17 = arith.constant 17 : index
      %38 = vector.load %arg3[%c0_17, %c0_18, %c17] : memref<1x16x256xf32, #tpu.memory_space<vmem>>, vector<1x16x128xf32>
      %39 = vector.shape_cast %38 : vector<1x16x128xf32> to vector<16x128xf32>
      %cst_19 = arith.constant 4.000000e+00 : f32
      %40 = vector.broadcast %cst_19 : f32 to vector<16x128xf32>
      %41 = arith.addf %17, %40 : vector<16x128xf32>
      %42 = arith.subf %41, %39 : vector<16x128xf32>
      %43 = math.absf %42 : vector<16x128xf32>
      %44 = arith.minimumf %37, %43 : vector<16x128xf32>
      %c0_20 = arith.constant 0 : index
      %c0_21 = arith.constant 0 : index
      %c16 = arith.constant 16 : index
      %45 = vector.load %arg3[%c0_20, %c0_21, %c16] : memref<1x16x256xf32, #tpu.memory_space<vmem>>, vector<1x16x128xf32>
      %46 = vector.shape_cast %45 : vector<1x16x128xf32> to vector<16x128xf32>
      %cst_22 = arith.constant 5.000000e+00 : f32
      %47 = vector.broadcast %cst_22 : f32 to vector<16x128xf32>
      %48 = arith.addf %17, %47 : vector<16x128xf32>
      %49 = arith.subf %48, %46 : vector<16x128xf32>
      %50 = math.absf %49 : vector<16x128xf32>
      %51 = arith.minimumf %44, %50 : vector<16x128xf32>
      %c0_23 = arith.constant 0 : index
      %c0_24 = arith.constant 0 : index
      %c15 = arith.constant 15 : index
      %52 = vector.load %arg3[%c0_23, %c0_24, %c15] : memref<1x16x256xf32, #tpu.memory_space<vmem>>, vector<1x16x128xf32>
      %53 = vector.shape_cast %52 : vector<1x16x128xf32> to vector<16x128xf32>
      %cst_25 = arith.constant 6.000000e+00 : f32
      %54 = vector.broadcast %cst_25 : f32 to vector<16x128xf32>
      %55 = arith.addf %17, %54 : vector<16x128xf32>
      %56 = arith.subf %55, %53 : vector<16x128xf32>
      %57 = math.absf %56 : vector<16x128xf32>
      %58 = arith.minimumf %51, %57 : vector<16x128xf32>
      %c0_26 = arith.constant 0 : index
      %c0_27 = arith.constant 0 : index
      %c14 = arith.constant 14 : index
      %59 = vector.load %arg3[%c0_26, %c0_27, %c14] : memref<1x16x256xf32, #tpu.memory_space<vmem>>, vector<1x16x128xf32>
      %60 = vector.shape_cast %59 : vector<1x16x128xf32> to vector<16x128xf32>
      %cst_28 = arith.constant 7.000000e+00 : f32
      %61 = vector.broadcast %cst_28 : f32 to vector<16x128xf32>
      %62 = arith.addf %17, %61 : vector<16x128xf32>
      %63 = arith.subf %62, %60 : vector<16x128xf32>
      %64 = math.absf %63 : vector<16x128xf32>
      %65 = arith.minimumf %58, %64 : vector<16x128xf32>
      %c0_29 = arith.constant 0 : index
      %c0_30 = arith.constant 0 : index
      %c13 = arith.constant 13 : index
      %66 = vector.load %arg3[%c0_29, %c0_30, %c13] : memref<1x16x256xf32, #tpu.memory_space<vmem>>, vector<1x16x128xf32>
      %67 = vector.shape_cast %66 : vector<1x16x128xf32> to vector<16x128xf32>
      %cst_31 = arith.constant 8.000000e+00 : f32
      %68 = vector.broadcast %cst_31 : f32 to vector<16x128xf32>
      %69 = arith.addf %17, %68 : vector<16x128xf32>
      %70 = arith.subf %69, %67 : vector<16x128xf32>
      %71 = math.absf %70 : vector<16x128xf32>
      %72 = arith.minimumf %65, %71 : vector<16x128xf32>
      %c0_32 = arith.constant 0 : index
      %c0_33 = arith.constant 0 : index
      %c12 = arith.constant 12 : index
      %73 = vector.load %arg3[%c0_32, %c0_33, %c12] : memref<1x16x256xf32, #tpu.memory_space<vmem>>, vector<1x16x128xf32>
      %74 = vector.shape_cast %73 : vector<1x16x128xf32> to vector<16x128xf32>
      %cst_34 = arith.constant 9.000000e+00 : f32
      %75 = vector.broadcast %cst_34 : f32 to vector<16x128xf32>
      %76 = arith.addf %17, %75 : vector<16x128xf32>
      %77 = arith.subf %76, %74 : vector<16x128xf32>
      %78 = math.absf %77 : vector<16x128xf32>
      %79 = arith.minimumf %72, %78 : vector<16x128xf32>
      %c0_35 = arith.constant 0 : index
      %c0_36 = arith.constant 0 : index
      %c11 = arith.constant 11 : index
      %80 = vector.load %arg3[%c0_35, %c0_36, %c11] : memref<1x16x256xf32, #tpu.memory_space<vmem>>, vector<1x16x128xf32>
      %81 = vector.shape_cast %80 : vector<1x16x128xf32> to vector<16x128xf32>
      %cst_37 = arith.constant 1.000000e+01 : f32
      %82 = vector.broadcast %cst_37 : f32 to vector<16x128xf32>
      %83 = arith.addf %17, %82 : vector<16x128xf32>
      %84 = arith.subf %83, %81 : vector<16x128xf32>
      %85 = math.absf %84 : vector<16x128xf32>
      %86 = arith.minimumf %79, %85 : vector<16x128xf32>
      %c0_38 = arith.constant 0 : index
      %c0_39 = arith.constant 0 : index
      %c10 = arith.constant 10 : index
      %87 = vector.load %arg3[%c0_38, %c0_39, %c10] : memref<1x16x256xf32, #tpu.memory_space<vmem>>, vector<1x16x128xf32>
      %88 = vector.shape_cast %87 : vector<1x16x128xf32> to vector<16x128xf32>
      %cst_40 = arith.constant 1.100000e+01 : f32
      %89 = vector.broadcast %cst_40 : f32 to vector<16x128xf32>
      %90 = arith.addf %17, %89 : vector<16x128xf32>
      %91 = arith.subf %90, %88 : vector<16x128xf32>
      %92 = math.absf %91 : vector<16x128xf32>
      %93 = arith.minimumf %86, %92 : vector<16x128xf32>
      %c0_41 = arith.constant 0 : index
      %c0_42 = arith.constant 0 : index
      %c9 = arith.constant 9 : index
      %94 = vector.load %arg3[%c0_41, %c0_42, %c9] : memref<1x16x256xf32, #tpu.memory_space<vmem>>, vector<1x16x128xf32>
      %95 = vector.shape_cast %94 : vector<1x16x128xf32> to vector<16x128xf32>
      %cst_43 = arith.constant 1.200000e+01 : f32
      %96 = vector.broadcast %cst_43 : f32 to vector<16x128xf32>
      %97 = arith.addf %17, %96 : vector<16x128xf32>
      %98 = arith.subf %97, %95 : vector<16x128xf32>
      %99 = math.absf %98 : vector<16x128xf32>
      %100 = arith.minimumf %93, %99 : vector<16x128xf32>
      %c0_44 = arith.constant 0 : index
      %c0_45 = arith.constant 0 : index
      %c8 = arith.constant 8 : index
      %101 = vector.load %arg3[%c0_44, %c0_45, %c8] : memref<1x16x256xf32, #tpu.memory_space<vmem>>, vector<1x16x128xf32>
      %102 = vector.shape_cast %101 : vector<1x16x128xf32> to vector<16x128xf32>
      %cst_46 = arith.constant 1.300000e+01 : f32
      %103 = vector.broadcast %cst_46 : f32 to vector<16x128xf32>
      %104 = arith.addf %17, %103 : vector<16x128xf32>
      %105 = arith.subf %104, %102 : vector<16x128xf32>
      %106 = math.absf %105 : vector<16x128xf32>
      %107 = arith.minimumf %100, %106 : vector<16x128xf32>
      %c0_47 = arith.constant 0 : index
      %c0_48 = arith.constant 0 : index
      %c7 = arith.constant 7 : index
      %108 = vector.load %arg3[%c0_47, %c0_48, %c7] : memref<1x16x256xf32, #tpu.memory_space<vmem>>, vector<1x16x128xf32>
      %109 = vector.shape_cast %108 : vector<1x16x128xf32> to vector<16x128xf32>
      %cst_49 = arith.constant 1.400000e+01 : f32
      %110 = vector.broadcast %cst_49 : f32 to vector<16x128xf32>
      %111 = arith.addf %17, %110 : vector<16x128xf32>
      %112 = arith.subf %111, %109 : vector<16x128xf32>
      %113 = math.absf %112 : vector<16x128xf32>
      %114 = arith.minimumf %107, %113 : vector<16x128xf32>
      %c0_50 = arith.constant 0 : index
      %c0_51 = arith.constant 0 : index
      %c6 = arith.constant 6 : index
      %115 = vector.load %arg3[%c0_50, %c0_51, %c6] : memref<1x16x256xf32, #tpu.memory_space<vmem>>, vector<1x16x128xf32>
      %116 = vector.shape_cast %115 : vector<1x16x128xf32> to vector<16x128xf32>
      %cst_52 = arith.constant 1.500000e+01 : f32
      %117 = vector.broadcast %cst_52 : f32 to vector<16x128xf32>
      %118 = arith.addf %17, %117 : vector<16x128xf32>
      %119 = arith.subf %118, %116 : vector<16x128xf32>
      %120 = math.absf %119 : vector<16x128xf32>
      %121 = arith.minimumf %114, %120 : vector<16x128xf32>
      %c0_53 = arith.constant 0 : index
      %c0_54 = arith.constant 0 : index
      %c5 = arith.constant 5 : index
      %122 = vector.load %arg3[%c0_53, %c0_54, %c5] : memref<1x16x256xf32, #tpu.memory_space<vmem>>, vector<1x16x128xf32>
      %123 = vector.shape_cast %122 : vector<1x16x128xf32> to vector<16x128xf32>
      %cst_55 = arith.constant 1.600000e+01 : f32
      %124 = vector.broadcast %cst_55 : f32 to vector<16x128xf32>
      %125 = arith.addf %17, %124 : vector<16x128xf32>
      %126 = arith.subf %125, %123 : vector<16x128xf32>
      %127 = math.absf %126 : vector<16x128xf32>
      %128 = arith.minimumf %121, %127 : vector<16x128xf32>
      %c0_56 = arith.constant 0 : index
      %c0_57 = arith.constant 0 : index
      %c4 = arith.constant 4 : index
      %129 = vector.load %arg3[%c0_56, %c0_57, %c4] : memref<1x16x256xf32, #tpu.memory_space<vmem>>, vector<1x16x128xf32>
      %130 = vector.shape_cast %129 : vector<1x16x128xf32> to vector<16x128xf32>
      %cst_58 = arith.constant 1.700000e+01 : f32
      %131 = vector.broadcast %cst_58 : f32 to vector<16x128xf32>
      %132 = arith.addf %17, %131 : vector<16x128xf32>
      %133 = arith.subf %132, %130 : vector<16x128xf32>
      %134 = math.absf %133 : vector<16x128xf32>
      %135 = arith.minimumf %128, %134 : vector<16x128xf32>
      %c0_59 = arith.constant 0 : index
      %c0_60 = arith.constant 0 : index
      %c3 = arith.constant 3 : index
      %136 = vector.load %arg3[%c0_59, %c0_60, %c3] : memref<1x16x256xf32, #tpu.memory_space<vmem>>, vector<1x16x128xf32>
      %137 = vector.shape_cast %136 : vector<1x16x128xf32> to vector<16x128xf32>
      %cst_61 = arith.constant 1.800000e+01 : f32
      %138 = vector.broadcast %cst_61 : f32 to vector<16x128xf32>
      %139 = arith.addf %17, %138 : vector<16x128xf32>
      %140 = arith.subf %139, %137 : vector<16x128xf32>
      %141 = math.absf %140 : vector<16x128xf32>
      %142 = arith.minimumf %135, %141 : vector<16x128xf32>
      %c0_62 = arith.constant 0 : index
      %c0_63 = arith.constant 0 : index
      %c2 = arith.constant 2 : index
      %143 = vector.load %arg3[%c0_62, %c0_63, %c2] : memref<1x16x256xf32, #tpu.memory_space<vmem>>, vector<1x16x128xf32>
      %144 = vector.shape_cast %143 : vector<1x16x128xf32> to vector<16x128xf32>
      %cst_64 = arith.constant 1.900000e+01 : f32
      %145 = vector.broadcast %cst_64 : f32 to vector<16x128xf32>
      %146 = arith.addf %17, %145 : vector<16x128xf32>
      %147 = arith.subf %146, %144 : vector<16x128xf32>
      %148 = math.absf %147 : vector<16x128xf32>
      %149 = arith.minimumf %142, %148 : vector<16x128xf32>
      %c0_65 = arith.constant 0 : index
      %c0_66 = arith.constant 0 : index
      %c1 = arith.constant 1 : index
      %150 = vector.load %arg3[%c0_65, %c0_66, %c1] : memref<1x16x256xf32, #tpu.memory_space<vmem>>, vector<1x16x128xf32>
      %151 = vector.shape_cast %150 : vector<1x16x128xf32> to vector<16x128xf32>
      %cst_67 = arith.constant 2.000000e+01 : f32
      %152 = vector.broadcast %cst_67 : f32 to vector<16x128xf32>
      %153 = arith.addf %17, %152 : vector<16x128xf32>
      %154 = arith.subf %153, %151 : vector<16x128xf32>
      %155 = math.absf %154 : vector<16x128xf32>
      %156 = arith.minimumf %149, %155 : vector<16x128xf32>
      %c0_68 = arith.constant 0 : index
      %c0_69 = arith.constant 0 : index
      %c0_70 = arith.constant 0 : index
      %157 = vector.load %arg3[%c0_68, %c0_69, %c0_70] : memref<1x16x256xf32, #tpu.memory_space<vmem>>, vector<1x16x128xf32>
      %158 = vector.shape_cast %157 : vector<1x16x128xf32> to vector<16x128xf32>
      %cst_71 = arith.constant 2.100000e+01 : f32
      %159 = vector.broadcast %cst_71 : f32 to vector<16x128xf32>
      %160 = arith.addf %17, %159 : vector<16x128xf32>
      %161 = arith.subf %160, %158 : vector<16x128xf32>
      %162 = math.absf %161 : vector<16x128xf32>
      %163 = arith.minimumf %156, %162 : vector<16x128xf32>
      %cst_72 = arith.constant 1.000000e+00 : f32
      %164 = vector.broadcast %cst_72 : f32 to vector<16x128xf32>
      %165 = arith.minimumf %163, %164 : vector<16x128xf32>
      %c0_73 = arith.constant 0 : index
      %c0_74 = arith.constant 0 : index
      %c0_75 = arith.constant 0 : index
      %166 = vector.load %arg4[%c0_73, %c0_74, %c0_75] : memref<1x16x128xf32, #tpu.memory_space<vmem>>, vector<1x16x128xf32>
      %167 = vector.shape_cast %166 : vector<1x16x128xf32> to vector<16x128xf32>
      %168 = vector.shape_cast %165 : vector<16x128xf32> to vector<1x16x128xf32>
      tpu.vector_store %arg4[%c0_73, %c0_74, %c0_75], %168 {strides = array<i32>} : memref<1x16x128xf32, #tpu.memory_space<vmem>>, vector<1x16x128xf32>,
    } else {
    }
    return
  }
  func.func @transform_0(%arg0: i32, %arg1: i32, %arg2: memref<3xi32, #tpu.memory_space<smem>>) -> (i32, i32, i32) {
    %c0_i32 = arith.constant 0 : i32
    %c0_i32_0 = arith.constant 0 : i32
    return %arg0, %arg1, %c0_i32 : i32, i32, i32
  }
  func.func @transform_1(%arg0: i32, %arg1: i32, %arg2: memref<3xi32, #tpu.memory_space<smem>>) -> (i32, i32, i32) {
    %c0_i32 = arith.constant 0 : i32
    %c0_i32_0 = arith.constant 0 : i32
    return %arg0, %arg1, %c0_i32 : i32, i32, i32
  }
}

</mosaic_0001>

<llo_original>
// kernel: tpu_custom_call.1
$region0: #{tpu_custom_call.1}
  #allocation0 [shape = 'u32[]', space=smem, size = 0x4, offset = 0x4, fixed_abs, tag = 'smem constant byte address 0x4 - core index']
  #allocation1 [shape = 'u32[72,128]{1,0:T(1,128)}', space=vmem, size = 0x9000, scoped, tag = 'internal scratch']
  #allocation2 [shape = 's32[1]{0}', space=sflag, size = 0x4, scoped, tag = 'scoped memory for tpu_custom_call.1']
  #allocation3 [shape = 'u8[512]{0}', space=smem, size = 0x200, scoped, tag = 'prefetched SMEM operand 0']
  %s0 = inlined_call_operand.hbm [shape: s32[3], index: 0, kind: input, shape index: {}]
  %s1 = inlined_call_operand.hbm [shape: f32[3,16,256], index: 1, kind: input, shape index: {}]
  %s2 = inlined_call_operand.hbm [shape: f32[3,16,128], index: 2, kind: output, shape index: {}]
  %s3 = sld [smem:[#allocation0]]
  $region53: #{tpu_custom_call.1} parent=0
    _
  %s5 = ssub.s32 1, %s3
  %s6 = scalar_select 0, %s5, %s3
  %s8 = sshll.u32 %s0, 4
  %s9 = int_to_ptr.hbm [resolvable:$true] %s8
  %11 = dma.hbm_to_smem %s9, 16, [#allocation3], [#allocation2]
  %13 = dma.done [#allocation2], 16
  %14 = sfence
  $region1: #{tpu_custom_call.1} parent=0
    #allocation4 [shape = 'u8[32768]{0}', space=vmem, size = 0x8000, scoped, tag = 'input window, operand 1']
    #allocation5 [shape = 's32[2]{0}', space=sflag, size = 0x8, scoped, tag = 'scoped memory for tpu_custom_call.1']
    #allocation6 [shape = 's32[2]{0}', space=sflag, size = 0x8, scoped, tag = 'scoped memory for tpu_custom_call.1']
    #allocation7 [shape = 'u8[16384]{0}', space=vmem, size = 0x4000, scoped, tag = 'output window, operand 0']
    %15 = vsyncpa [#allocation5], 0
    %s16 = scalar_lea.sflag [#allocation5], 1
    %17 = vsyncpa %s16, 0
    %18 = vsyncpa [#allocation6], 0
    %s19 = scalar_lea.sflag [#allocation6], 1
    %20 = vsyncpa %s19, 0
    loop: start=0, step=1, limit=5
    $region2: #{tpu_custom_call.1} parent=1 // loop_pre_header
      _
    $region3: #{tpu_custom_call.1} parent=1 // loop_header
      %s22 = sphi 0, %s26
      %p23 = scmp.ge.s32.totalorder %s22, 5
      %s29 = sphi 0, %s41
      %s30 = sphi 0, %s37
      %s31 = sphi 0, %s29
      %s32 = sphi 0, %s30
      %s33 = sphi 0, %s31
      %s34 = sphi 0, %s32
      %s46 = sphi 0, %s48
      %s49 = sphi 0, %s46
      %s50 = sphi 0, %s49
      %s66 = sphi 0, %s50
      %s74 = sphi 0, %s76
      %s77 = sphi 0, %s74
      %s78 = sphi 0, %s77
      %s94 = sphi 0, %s78
    $region4: #{tpu_custom_call.1} parent=1 // loop_header_branch
      %25 = sbr.rel (%p23) target = $region8
    $region5: #{tpu_custom_call.1} parent=1 // loop_body
      %s27 = ssub.s32 %s22, 1
      %s28 = ssub.s32 %s22, 2
      %s35 = sadd.s32 1, %s30
      %p36 = scmp.ge.s32.totalorder %s35, 1
      %s37 = scalar_select %p36, 0, %s35
      %s38 = sadd.s32 1, %s29
      %s39 = scalar_select %p36, %s38, %s29
      %p40 = scmp.ge.s32.totalorder %s39, 3
      %s41 = scalar_select %p40, 0, %s39
      %s42 = ssub.s32 %s29, %s41
      %s43 = ssub.s32 %s30, %s37
      %s44 = sor.u32 %s42, %s43
      %p45 = scmp.eq.s32.totalorder %s44, 0
      %s47 = sadd.s32 %s46, 1
      %s48 = scalar_select %p45, %s46, %s47
      %p51 = pneg %p45
      %p52 = scmp.eq.s32.totalorder %s22, 2
      %p53 = por %p51, %p52
      %p54 = scmp.ne.s32.totalorder %s46, %s49
      %p55 = scmp.eq.s32.totalorder %s22, 0
      %p56 = por %p54, %p55
      %p57 = scmp.ne.s32.totalorder %s46, %s49
      %p58 = scmp.eq.s32.totalorder %s27, 2
      %p59 = por %p57, %p58
      %p60 = scmp.ne.s32.totalorder %s49, %s50
      %p61 = scmp.eq.s32.totalorder %s27, 0
      %p62 = por %p60, %p61
      %p63 = scmp.ne.s32.totalorder %s49, %s50
      %p64 = scmp.eq.s32.totalorder %s28, 2
      %p65 = por %p63, %p64
      %p67 = scmp.ne.s32.totalorder %s50, %s66
      %p68 = scmp.eq.s32.totalorder %s28, 0
      %p69 = por %p67, %p68
      %s70 = ssub.s32 %s29, %s41
      %s71 = ssub.s32 %s30, %s37
      %s72 = sor.u32 %s70, %s71
      %p73 = scmp.eq.s32.totalorder %s72, 0
      %s75 = sadd.s32 %s74, 1
      %s76 = scalar_select %p73, %s74, %s75
      %p79 = pneg %p73
      %p80 = scmp.eq.s32.totalorder %s22, 2
      %p81 = por %p79, %p80
      %p82 = scmp.ne.s32.totalorder %s74, %s77
      %p83 = scmp.eq.s32.totalorder %s22, 0
      %p84 = por %p82, %p83
      %p85 = scmp.ne.s32.totalorder %s74, %s77
      %p86 = scmp.eq.s32.totalorder %s27, 2
      %p87 = por %p85, %p86
      %p88 = scmp.ne.s32.totalorder %s77, %s78
      %p89 = scmp.eq.s32.totalorder %s27, 0
      %p90 = por %p88, %p89
      %p91 = scmp.ne.s32.totalorder %s77, %s78
      %p92 = scmp.eq.s32.totalorder %s28, 2
      %p93 = por %p91, %p92
      %p95 = scmp.ne.s32.totalorder %s78, %s94
      %p96 = scmp.eq.s32.totalorder %s28, 0
      %p97 = por %p95, %p96
      %p98 = scmp.le.s32.totalorder 1, %s22
      %p99 = scmp.lt.s32.totalorder %s22, 4
      %p100 = pnand %p98, %p99
      %p101 = pneg %p100
      // Predicated region
      $region9: #{tpu_custom_call.1} parent=5 // pred_check
        _
      $region10: #{tpu_custom_call.1} parent=5 // pred_check_branch
        %103 = sbr.rel (%p100) target = $region12
      $region11: #{tpu_custom_call.1} parent=5 // pred_region
        %s104 = ssub.s32 %s22, 1
      $region12: #{tpu_custom_call.1} parent=5 // pred_fallthru
        _
      %p105 = scmp.lt.s32.totalorder %s22, 3
      // Predicated region
      $region13: #{tpu_custom_call.1} parent=5 // pred_check
        %p106 = pneg %p105
      $region14: #{tpu_custom_call.1} parent=5 // pred_check_branch
        %108 = sbr.rel (%p106) target = $region16
      $region15: #{tpu_custom_call.1} parent=5 // pred_region
        // Predicated region
        $region17: #{tpu_custom_call.1} parent=15 // pred_check
          %p109 = pneg %p56
        $region18: #{tpu_custom_call.1} parent=15 // pred_check_branch
          %111 = sbr.rel (%p109) target = $region20
        $region19: #{tpu_custom_call.1} parent=15 // pred_region
          %s112 = sand.u32 %s46, 1
          %s113 = scalar_lea.sflag [#allocation5], %s112
          %s114 = sand.u32 %s46, 1
          %s115 = smul.addr %s114, 32
          %s116 = scalar_lea.vmem [#allocation4], %s115
          %s117 = smul.u32 2, %s30
          %119 = vsyncadd %s113, 0
          %s120 = smul.addr %s117, 2
          %s121 = smul.addr %s29, 4
          %s122 = sadd.s32 %s120, %s121
          %s123 = smul.addr %s122, 8
          %s124 = scalar_lea.hbm %s1, %s123
          %s125 = sshll.u32 %s124, 4
          %s126 = int_to_ptr.hbm [resolvable:$true] %s125
          %s127 = sshll.u32 %s116, 4
          %s128 = int_to_ptr.vmem [resolvable:$true] %s127
          %133 = dma.hbm_to_vmem [thread:$0]  %s126, 512, %s128, %s113, 256, 256, 16
        $region20: #{tpu_custom_call.1} parent=15 // pred_fallthru
          _
      $region16: #{tpu_custom_call.1} parent=5 // pred_fallthru
        _
      %p134 = scmp.le.s32.totalorder 1, %s22
      %p135 = scmp.lt.s32.totalorder %s22, 4
      %p136 = pnand %p134, %p135
      %p137 = pneg %p136
      // Predicated region
      $region21: #{tpu_custom_call.1} parent=5 // pred_check
        _
      $region22: #{tpu_custom_call.1} parent=5 // pred_check_branch
        %139 = sbr.rel (%p136) target = $region24
      $region23: #{tpu_custom_call.1} parent=5 // pred_region
        %s140 = ssub.s32 %s22, 1
        %s141 = sand.u32 %s49, 1
        %s142 = scalar_lea.sflag [#allocation5], %s141
        %s143 = sand.u32 %s49, 1
        %s144 = smul.addr %s143, 32
        %s145 = scalar_lea.vmem [#allocation4], %s144
        // Predicated region
        $region25: #{tpu_custom_call.1} parent=23 // pred_check
          %p146 = pneg %p62
        $region26: #{tpu_custom_call.1} parent=23 // pred_check_branch
          %148 = sbr.rel (%p146) target = $region28
        $region27: #{tpu_custom_call.1} parent=23 // pred_region
          %150 = dma.done %s142, 512
        $region28: #{tpu_custom_call.1} parent=23 // pred_fallthru
          _
        %s151 = sand.u32 %s49, 1
        %s152 = scalar_lea.sflag [#allocation5], %s151
        %s153 = sand.u32 %s49, 1
        %s154 = smul.addr %s153, 32
        %s155 = scalar_lea.vmem [#allocation4], %s154
        %p156 = pneg %p62
        %p157 = pneg %p59
        %p158 = pneg %p90
        %p159 = pneg %p87
        %s160 = sand.u32 %s77, 1
        %s161 = scalar_lea.sflag [#allocation6], %s160
        %s162 = sand.u32 %s77, 1
        %s163 = smul.addr %s162, 16
        %s164 = scalar_lea.vmem [#allocation7], %s163
        %s165 = smul.u32 2, %s32
        %s166 = smul.u32 2, %s32
        %s167 = sld [smem:[#allocation3 + %s31]]
        %p168 = scmp.eq.s32.totalorder %s167, 0
        // Predicated region
        $region29: #{tpu_custom_call.1} parent=23 // pred_check
          %p169 = pneg %p168
        $region30: #{tpu_custom_call.1} parent=23 // pred_check_branch
          %171 = sbr.rel (%p169) target = $region32
        $region31: #{tpu_custom_call.1} parent=23 // pred_region
          %172 = vst [vmem:[%s164] sm:$0xff] 0.0
          %173 = vst [vmem:[%s164 + $0x8] sm:$0xff] 0.0
        $region32: #{tpu_custom_call.1} parent=23 // pred_fallthru
          _
        %p174 = scmp.lt.s32.totalorder %s167, 0
        // Predicated region
        $region33: #{tpu_custom_call.1} parent=23 // pred_check
          %p175 = pneg %p174
        $region34: #{tpu_custom_call.1} parent=23 // pred_check_branch
          %177 = sbr.rel (%p175) target = $region36
        $region35: #{tpu_custom_call.1} parent=23 // pred_region
          %v178 = vld [vmem:[%s145] sm:$0xff]
          %v179 = vld [vmem:[%s145 + $0x8] sm:$0xff]
          %v180 = vld [vmem:[%s145 + $0x10] sm:$0xff]
          %v181 = vld [vmem:[%s145 + $0x18] sm:$0xff]
          %186 = vrot.lane.b32.xlu0 %v178, 127
          %v187 = vpop.permute.xlu0 %186
          %188 = vrot.lane.b32.xlu0 %v179, 127
          %v189 = vpop.permute.xlu0 %188
          %190 = vrot.lane.b32.xlu0 %v180, 127
          %v191 = vpop.permute.xlu0 %190
          %192 = vrot.lane.b32.xlu0 %v181, 127
          %v193 = vpop.permute.xlu0 %192
          %vm194 = vcmask 1039360
          %v195 = vsel %vm194, %v187, %v189
          %v196 = vsel %vm194, %v191, %v193
          %v201 = vadd.f32 %v178, %v195
          %v202 = vadd.f32 %v179, %v189
          %v203 = vadd.f32 %v180, %v196
          %v204 = vadd.f32 %v181, %v193
          %v205 = vmul.f32 %v201, 0.5
          %v206 = vmul.f32 %v202, 0.5
          %v207 = vmul.f32 %v203, 0.5
          %v208 = vmul.f32 %v204, 0.5
          %v209 = vadd.f32 %v205, 1.0
          %v210 = vadd.f32 %v206, 1.0
          %v211 = vadd.f32 %v207, 1.0
          %v212 = vadd.f32 %v208, 1.0
          %213 = vrot.lane.b32.xlu0 %v178, 126
          %v214 = vpop.permute.xlu0 %213
          %215 = vrot.lane.b32.xlu0 %v179, 126
          %v216 = vpop.permute.xlu0 %215
          %217 = vrot.lane.b32.xlu0 %v180, 126
          %v218 = vpop.permute.xlu0 %217
          %219 = vrot.lane.b32.xlu0 %v181, 126
          %v220 = vpop.permute.xlu0 %219
          %vm221 = vcmask 1031168
          %v222 = vsel %vm221, %v214, %v216
          %v223 = vsel %vm221, %v218, %v220
          %v228 = vsub.f32 %v209, %v222
          %v229 = vsub.f32 %v210, %v216
          %v230 = vsub.f32 %v211, %v223
          %v231 = vsub.f32 %v212, %v220
          %v232 = vand.u32 2147483647, %v228
          %v233 = vand.u32 2147483647, %v229
          %v234 = vand.u32 2147483647, %v230
          %v235 = vand.u32 2147483647, %v231
          %v236 = vadd.f32 %v205, 2.0
          %v237 = vadd.f32 %v206, 2.0
          %v238 = vadd.f32 %v207, 2.0
          %v239 = vadd.f32 %v208, 2.0
          %240 = vrot.lane.b32.xlu0 %v178, 125
          %v241 = vpop.permute.xlu0 %240
          %242 = vrot.lane.b32.xlu0 %v179, 125
          %v243 = vpop.permute.xlu0 %242
          %244 = vrot.lane.b32.xlu0 %v180, 125
          %v245 = vpop.permute.xlu0 %244
          %246 = vrot.lane.b32.xlu0 %v181, 125
          %v247 = vpop.permute.xlu0 %246
          %vm248 = vcmask 1022976
          %v249 = vsel %vm248, %v241, %v243
          %v250 = vsel %vm248, %v245, %v247
          %v255 = vsub.f32 %v236, %v249
          %v256 = vsub.f32 %v237, %v243
          %v257 = vsub.f32 %v238, %v250
          %v258 = vsub.f32 %v239, %v247
          %v259 = vand.u32 2147483647, %v255
          %v260 = vand.u32 2147483647, %v256
          %v261 = vand.u32 2147483647, %v257
          %v262 = vand.u32 2147483647, %v258
          %v263 = vmin.f32 %v232, %v259
          %v264 = vmin.f32 %v233, %v260
          %v265 = vmin.f32 %v234, %v261
          %v266 = vmin.f32 %v235, %v262
          %v267 = vadd.f32 %v205, 3.0
          %v268 = vadd.f32 %v206, 3.0
          %v269 = vadd.f32 %v207, 3.0
          %v270 = vadd.f32 %v208, 3.0
          %271 = vrot.lane.b32.xlu0 %v178, 124
          %v272 = vpop.permute.xlu0 %271
          %273 = vrot.lane.b32.xlu0 %v179, 124
          %v274 = vpop.permute.xlu0 %273
          %275 = vrot.lane.b32.xlu0 %v180, 124
          %v276 = vpop.permute.xlu0 %275
          %277 = vrot.lane.b32.xlu0 %v181, 124
          %v278 = vpop.permute.xlu0 %277
          %vm279 = vcmask 1014784
          %v280 = vsel %vm279, %v272, %v274
          %v281 = vsel %vm279, %v276, %v278
          %v286 = vsub.f32 %v267, %v280
          %v287 = vsub.f32 %v268, %v274
          %v288 = vsub.f32 %v269, %v281
          %v289 = vsub.f32 %v270, %v278
          %v290 = vand.u32 2147483647, %v286
          %v291 = vand.u32 2147483647, %v287
          %v292 = vand.u32 2147483647, %v288
          %v293 = vand.u32 2147483647, %v289
          %v294 = vmin.f32 %v263, %v290
          %v295 = vmin.f32 %v264, %v291
          %v296 = vmin.f32 %v265, %v292
          %v297 = vmin.f32 %v266, %v293
          %v298 = vadd.f32 %v205, 4.0
          %v299 = vadd.f32 %v206, 4.0
          %v300 = vadd.f32 %v207, 4.0
          %v301 = vadd.f32 %v208, 4.0
          %302 = vrot.lane.b32.xlu0 %v178, 123
          %v303 = vpop.permute.xlu0 %302
          %304 = vrot.lane.b32.xlu0 %v179, 123
          %v305 = vpop.permute.xlu0 %304
          %306 = vrot.lane.b32.xlu0 %v180, 123
          %v307 = vpop.permute.xlu0 %306
          %308 = vrot.lane.b32.xlu0 %v181, 123
          %v309 = vpop.permute.xlu0 %308
          %vm310 = vcmask 1006592
          %v311 = vsel %vm310, %v303, %v305
          %v312 = vsel %vm310, %v307, %v309
          %v317 = vsub.f32 %v298, %v311
          %v318 = vsub.f32 %v299, %v305
          %v319 = vsub.f32 %v300, %v312
          %v320 = vsub.f32 %v301, %v309
          %v321 = vand.u32 2147483647, %v317
          %v322 = vand.u32 2147483647, %v318
          %v323 = vand.u32 2147483647, %v319
          %v324 = vand.u32 2147483647, %v320
          %v325 = vmin.f32 %v294, %v321
          %v326 = vmin.f32 %v295, %v322
          %v327 = vmin.f32 %v296, %v323
          %v328 = vmin.f32 %v297, %v324
          %v329 = vadd.f32 %v205, 5.0
          %v330 = vadd.f32 %v206, 5.0
          %v331 = vadd.f32 %v207, 5.0
          %v332 = vadd.f32 %v208, 5.0
          %333 = vrot.lane.b32.xlu0 %v178, 122
          %v334 = vpop.permute.xlu0 %333
          %335 = vrot.lane.b32.xlu0 %v179, 122
          %v336 = vpop.permute.xlu0 %335
          %337 = vrot.lane.b32.xlu0 %v180, 122
          %v338 = vpop.permute.xlu0 %337
          %339 = vrot.lane.b32.xlu0 %v181, 122
          %v340 = vpop.permute.xlu0 %339
          %vm341 = vcmask 998400
          %v342 = vsel %vm341, %v334, %v336
          %v343 = vsel %vm341, %v338, %v340
          %v348 = vsub.f32 %v329, %v342
          %v349 = vsub.f32 %v330, %v336
          %v350 = vsub.f32 %v331, %v343
          %v351 = vsub.f32 %v332, %v340
          %v352 = vand.u32 2147483647, %v348
          %v353 = vand.u32 2147483647, %v349
          %v354 = vand.u32 2147483647, %v350
          %v355 = vand.u32 2147483647, %v351
          %v356 = vmin.f32 %v325, %v352
          %v357 = vmin.f32 %v326, %v353
          %v358 = vmin.f32 %v327, %v354
          %v359 = vmin.f32 %v328, %v355
          %v360 = vadd.f32 %v205, 6.0
          %v361 = vadd.f32 %v206, 6.0
          %v362 = vadd.f32 %v207, 6.0
          %v363 = vadd.f32 %v208, 6.0
          %364 = vrot.lane.b32.xlu0 %v178, 121
          %v365 = vpop.permute.xlu0 %364
          %366 = vrot.lane.b32.xlu0 %v179, 121
          %v367 = vpop.permute.xlu0 %366
          %368 = vrot.lane.b32.xlu0 %v180, 121
          %v369 = vpop.permute.xlu0 %368
          %370 = vrot.lane.b32.xlu0 %v181, 121
          %v371 = vpop.permute.xlu0 %370
          %vm372 = vcmask 990208
          %v373 = vsel %vm372, %v365, %v367
          %v374 = vsel %vm372, %v369, %v371
          %v379 = vsub.f32 %v360, %v373
          %v380 = vsub.f32 %v361, %v367
          %v381 = vsub.f32 %v362, %v374
          %v382 = vsub.f32 %v363, %v371
          %v383 = vand.u32 2147483647, %v379
          %v384 = vand.u32 2147483647, %v380
          %v385 = vand.u32 2147483647, %v381
          %v386 = vand.u32 2147483647, %v382
          %v387 = vmin.f32 %v356, %v383
          %v388 = vmin.f32 %v357, %v384
          %v389 = vmin.f32 %v358, %v385
          %v390 = vmin.f32 %v359, %v386
          %v391 = vadd.f32 %v205, 7.0
          %v392 = vadd.f32 %v206, 7.0
          %v393 = vadd.f32 %v207, 7.0
          %v394 = vadd.f32 %v208, 7.0
          %395 = vrot.lane.b32.xlu0 %v178, 120
          %v396 = vpop.permute.xlu0 %395
          %397 = vrot.lane.b32.xlu0 %v179, 120
          %v398 = vpop.permute.xlu0 %397
          %399 = vrot.lane.b32.xlu0 %v180, 120
          %v400 = vpop.permute.xlu0 %399
          %401 = vrot.lane.b32.xlu0 %v181, 120
          %v402 = vpop.permute.xlu0 %401
          %vm403 = vcmask 982016
          %v404 = vsel %vm403, %v396, %v398
          %v405 = vsel %vm403, %v400, %v402
          %v410 = vsub.f32 %v391, %v404
          %v411 = vsub.f32 %v392, %v398
          %v412 = vsub.f32 %v393, %v405
          %v413 = vsub.f32 %v394, %v402
          %v414 = vand.u32 2147483647, %v410
          %v415 = vand.u32 2147483647, %v411
          %v416 = vand.u32 2147483647, %v412
          %v417 = vand.u32 2147483647, %v413
          %v418 = vmin.f32 %v387, %v414
          %v419 = vmin.f32 %v388, %v415
          %v420 = vmin.f32 %v389, %v416
          %v421 = vmin.f32 %v390, %v417
          %v422 = vadd.f32 %v205, 8.0
          %v423 = vadd.f32 %v206, 8.0
          %v424 = vadd.f32 %v207, 8.0
          %v425 = vadd.f32 %v208, 8.0
          %426 = vrot.lane.b32.xlu0 %v178, 119
          %v427 = vpop.permute.xlu0 %426
          %428 = vrot.lane.b32.xlu0 %v179, 119
          %v429 = vpop.permute.xlu0 %428
          %430 = vrot.lane.b32.xlu0 %v180, 119
          %v431 = vpop.permute.xlu0 %430
          %432 = vrot.lane.b32.xlu0 %v181, 119
          %v433 = vpop.permute.xlu0 %432
          %vm434 = vcmask 973824
          %v435 = vsel %vm434, %v427, %v429
          %v436 = vsel %vm434, %v431, %v433
          %v441 = vsub.f32 %v422, %v435
          %v442 = vsub.f32 %v423, %v429
          %v443 = vsub.f32 %v424, %v436
          %v444 = vsub.f32 %v425, %v433
          %v445 = vand.u32 2147483647, %v441
          %v446 = vand.u32 2147483647, %v442
          %v447 = vand.u32 2147483647, %v443
          %v448 = vand.u32 2147483647, %v444
          %v449 = vmin.f32 %v418, %v445
          %v450 = vmin.f32 %v419, %v446
          %v451 = vmin.f32 %v420, %v447
          %v452 = vmin.f32 %v421, %v448
          %v453 = vadd.f32 %v205, 9.0
          %v454 = vadd.f32 %v206, 9.0
          %v455 = vadd.f32 %v207, 9.0
          %v456 = vadd.f32 %v208, 9.0
          %457 = vrot.lane.b32.xlu0 %v178, 118
          %v458 = vpop.permute.xlu0 %457
          %459 = vrot.lane.b32.xlu0 %v179, 118
          %v460 = vpop.permute.xlu0 %459
          %461 = vrot.lane.b32.xlu0 %v180, 118
          %v462 = vpop.permute.xlu0 %461
          %463 = vrot.lane.b32.xlu0 %v181, 118
          %v464 = vpop.permute.xlu0 %463
          %vm465 = vcmask 965632
          %v466 = vsel %vm465, %v458, %v460
          %v467 = vsel %vm465, %v462, %v464
          %v472 = vsub.f32 %v453, %v466
          %v473 = vsub.f32 %v454, %v460
          %v474 = vsub.f32 %v455, %v467
          %v475 = vsub.f32 %v456, %v464
          %v476 = vand.u32 2147483647, %v472
          %v477 = vand.u32 2147483647, %v473
          %v478 = vand.u32 2147483647, %v474
          %v479 = vand.u32 2147483647, %v475
          %v480 = vmin.f32 %v449, %v476
          %v481 = vmin.f32 %v450, %v477
          %v482 = vmin.f32 %v451, %v478
          %v483 = vmin.f32 %v452, %v479
          %v484 = vadd.f32 %v205, 10.0
          %v485 = vadd.f32 %v206, 10.0
          %v486 = vadd.f32 %v207, 10.0
          %v487 = vadd.f32 %v208, 10.0
          %488 = vrot.lane.b32.xlu0 %v178, 117
          %v489 = vpop.permute.xlu0 %488
          %490 = vrot.lane.b32.xlu0 %v179, 117
          %v491 = vpop.permute.xlu0 %490
          %492 = vrot.lane.b32.xlu0 %v180, 117
          %v493 = vpop.permute.xlu0 %492
          %494 = vrot.lane.b32.xlu0 %v181, 117
          %v495 = vpop.permute.xlu0 %494
          %vm496 = vcmask 957440
          %v497 = vsel %vm496, %v489, %v491
          %v498 = vsel %vm496, %v493, %v495
          %v503 = vsub.f32 %v484, %v497
          %v504 = vsub.f32 %v485, %v491
          %v505 = vsub.f32 %v486, %v498
          %v506 = vsub.f32 %v487, %v495
          %v507 = vand.u32 2147483647, %v503
          %v508 = vand.u32 2147483647, %v504
          %v509 = vand.u32 2147483647, %v505
          %v510 = vand.u32 2147483647, %v506
          %v511 = vmin.f32 %v480, %v507
          %v512 = vmin.f32 %v481, %v508
          %v513 = vmin.f32 %v482, %v509
          %v514 = vmin.f32 %v483, %v510
          %v515 = vadd.f32 %v205, 11.0
          %v516 = vadd.f32 %v206, 11.0
          %v517 = vadd.f32 %v207, 11.0
          %v518 = vadd.f32 %v208, 11.0
          %519 = vrot.lane.b32.xlu0 %v178, 116
          %v520 = vpop.permute.xlu0 %519
          %521 = vrot.lane.b32.xlu0 %v179, 116
          %v522 = vpop.permute.xlu0 %521
          %523 = vrot.lane.b32.xlu0 %v180, 116
          %v524 = vpop.permute.xlu0 %523
          %525 = vrot.lane.b32.xlu0 %v181, 116
          %v526 = vpop.permute.xlu0 %525
          %vm527 = vcmask 949248
          %v528 = vsel %vm527, %v520, %v522
          %v529 = vsel %vm527, %v524, %v526
          %v534 = vsub.f32 %v515, %v528
          %v535 = vsub.f32 %v516, %v522
          %v536 = vsub.f32 %v517, %v529
          %v537 = vsub.f32 %v518, %v526
          %v538 = vand.u32 2147483647, %v534
          %v539 = vand.u32 2147483647, %v535
          %v540 = vand.u32 2147483647, %v536
          %v541 = vand.u32 2147483647, %v537
          %v542 = vmin.f32 %v511, %v538
          %v543 = vmin.f32 %v512, %v539
          %v544 = vmin.f32 %v513, %v540
          %v545 = vmin.f32 %v514, %v541
          %v546 = vadd.f32 %v205, 12.0
          %v547 = vadd.f32 %v206, 12.0
          %v548 = vadd.f32 %v207, 12.0
          %v549 = vadd.f32 %v208, 12.0
          %550 = vrot.lane.b32.xlu0 %v178, 115
          %v551 = vpop.permute.xlu0 %550
          %552 = vrot.lane.b32.xlu0 %v179, 115
          %v553 = vpop.permute.xlu0 %552
          %554 = vrot.lane.b32.xlu0 %v180, 115
          %v555 = vpop.permute.xlu0 %554
          %556 = vrot.lane.b32.xlu0 %v181, 115
          %v557 = vpop.permute.xlu0 %556
          %vm558 = vcmask 941056
          %v559 = vsel %vm558, %v551, %v553
          %v560 = vsel %vm558, %v555, %v557
          %v565 = vsub.f32 %v546, %v559
          %v566 = vsub.f32 %v547, %v553
          %v567 = vsub.f32 %v548, %v560
          %v568 = vsub.f32 %v549, %v557
          %v569 = vand.u32 2147483647, %v565
          %v570 = vand.u32 2147483647, %v566
          %v571 = vand.u32 2147483647, %v567
          %v572 = vand.u32 2147483647, %v568
          %v573 = vmin.f32 %v542, %v569
          %v574 = vmin.f32 %v543, %v570
          %v575 = vmin.f32 %v544, %v571
          %v576 = vmin.f32 %v545, %v572
          %v577 = vadd.f32 %v205, 13.0
          %v578 = vadd.f32 %v206, 13.0
          %v579 = vadd.f32 %v207, 13.0
          %v580 = vadd.f32 %v208, 13.0
          %581 = vrot.lane.b32.xlu0 %v178, 114
          %v582 = vpop.permute.xlu0 %581
          %583 = vrot.lane.b32.xlu0 %v179, 114
          %v584 = vpop.permute.xlu0 %583
          %585 = vrot.lane.b32.xlu0 %v180, 114
          %v586 = vpop.permute.xlu0 %585
          %587 = vrot.lane.b32.xlu0 %v181, 114
          %v588 = vpop.permute.xlu0 %587
          %vm589 = vcmask 932864
          %v590 = vsel %vm589, %v582, %v584
          %v591 = vsel %vm589, %v586, %v588
          %v596 = vsub.f32 %v577, %v590
          %v597 = vsub.f32 %v578, %v584
          %v598 = vsub.f32 %v579, %v591
          %v599 = vsub.f32 %v580, %v588
          %v600 = vand.u32 2147483647, %v596
          %v601 = vand.u32 2147483647, %v597
          %v602 = vand.u32 2147483647, %v598
          %v603 = vand.u32 2147483647, %v599
          %v604 = vmin.f32 %v573, %v600
          %v605 = vmin.f32 %v574, %v601
          %v606 = vmin.f32 %v575, %v602
          %v607 = vmin.f32 %v576, %v603
          %v608 = vadd.f32 %v205, 14.0
          %v609 = vadd.f32 %v206, 14.0
          %v610 = vadd.f32 %v207, 14.0
          %v611 = vadd.f32 %v208, 14.0
          %612 = vrot.lane.b32.xlu0 %v178, 113
          %v613 = vpop.permute.xlu0 %612
          %614 = vrot.lane.b32.xlu0 %v179, 113
          %v615 = vpop.permute.xlu0 %614
          %616 = vrot.lane.b32.xlu0 %v180, 113
          %v617 = vpop.permute.xlu0 %616
          %618 = vrot.lane.b32.xlu0 %v181, 113
          %v619 = vpop.permute.xlu0 %618
          %vm620 = vcmask 924672
          %v621 = vsel %vm620, %v613, %v615
          %v622 = vsel %vm620, %v617, %v619
          %v627 = vsub.f32 %v608, %v621
          %v628 = vsub.f32 %v609, %v615
          %v629 = vsub.f32 %v610, %v622
          %v630 = vsub.f32 %v611, %v619
          %v631 = vand.u32 2147483647, %v627
          %v632 = vand.u32 2147483647, %v628
          %v633 = vand.u32 2147483647, %v629
          %v634 = vand.u32 2147483647, %v630
          %v635 = vmin.f32 %v604, %v631
          %v636 = vmin.f32 %v605, %v632
          %v637 = vmin.f32 %v606, %v633
          %v638 = vmin.f32 %v607, %v634
          %v639 = vadd.f32 %v205, 15.0
          %v640 = vadd.f32 %v206, 15.0
          %v641 = vadd.f32 %v207, 15.0
          %v642 = vadd.f32 %v208, 15.0
          %643 = vrot.lane.b32.xlu0 %v178, 112
          %v644 = vpop.permute.xlu0 %643
          %645 = vrot.lane.b32.xlu0 %v179, 112
          %v646 = vpop.permute.xlu0 %645
          %647 = vrot.lane.b32.xlu0 %v180, 112
          %v648 = vpop.permute.xlu0 %647
          %649 = vrot.lane.b32.xlu0 %v181, 112
          %v650 = vpop.permute.xlu0 %649
          %vm651 = vcmask 916480
          %v652 = vsel %vm651, %v644, %v646
          %v653 = vsel %vm651, %v648, %v650
          %v658 = vsub.f32 %v639, %v652
          %v659 = vsub.f32 %v640, %v646
          %v660 = vsub.f32 %v641, %v653
          %v661 = vsub.f32 %v642, %v650
          %v662 = vand.u32 2147483647, %v658
          %v663 = vand.u32 2147483647, %v659
          %v664 = vand.u32 2147483647, %v660
          %v665 = vand.u32 2147483647, %v661
          %v666 = vmin.f32 %v635, %v662
          %v667 = vmin.f32 %v636, %v663
          %v668 = vmin.f32 %v637, %v664
          %v669 = vmin.f32 %v638, %v665
          %v670 = vadd.f32 %v205, 16.0
          %v671 = vadd.f32 %v206, 16.0
          %v672 = vadd.f32 %v207, 16.0
          %v673 = vadd.f32 %v208, 16.0
          %674 = vrot.lane.b32.xlu0 %v178, 111
          %v675 = vpop.permute.xlu0 %674
          %676 = vrot.lane.b32.xlu0 %v179, 111
          %v677 = vpop.permute.xlu0 %676
          %678 = vrot.lane.b32.xlu0 %v180, 111
          %v679 = vpop.permute.xlu0 %678
          %680 = vrot.lane.b32.xlu0 %v181, 111
          %v681 = vpop.permute.xlu0 %680
          %vm682 = vcmask 908288
          %v683 = vsel %vm682, %v675, %v677
          %v684 = vsel %vm682, %v679, %v681
          %v689 = vsub.f32 %v670, %v683
          %v690 = vsub.f32 %v671, %v677
          %v691 = vsub.f32 %v672, %v684
          %v692 = vsub.f32 %v673, %v681
          %v693 = vand.u32 2147483647, %v689
          %v694 = vand.u32 2147483647, %v690
          %v695 = vand.u32 2147483647, %v691
          %v696 = vand.u32 2147483647, %v692
          %v697 = vmin.f32 %v666, %v693
          %v698 = vmin.f32 %v667, %v694
          %v699 = vmin.f32 %v668, %v695
          %v700 = vmin.f32 %v669, %v696
          %v701 = vadd.f32 %v205, 17.0
          %v702 = vadd.f32 %v206, 17.0
          %v703 = vadd.f32 %v207, 17.0
          %v704 = vadd.f32 %v208, 17.0
          %705 = vrot.lane.b32.xlu0 %v178, 110
          %v706 = vpop.permute.xlu0 %705
          %707 = vrot.lane.b32.xlu0 %v179, 110
          %v708 = vpop.permute.xlu0 %707
          %709 = vrot.lane.b32.xlu0 %v180, 110
          %v710 = vpop.permute.xlu0 %709
          %711 = vrot.lane.b32.xlu0 %v181, 110
          %v712 = vpop.permute.xlu0 %711
          %vm713 = vcmask 900096
          %v714 = vsel %vm713, %v706, %v708
          %v715 = vsel %vm713, %v710, %v712
          %v720 = vsub.f32 %v701, %v714
          %v721 = vsub.f32 %v702, %v708
          %v722 = vsub.f32 %v703, %v715
          %v723 = vsub.f32 %v704, %v712
          %v724 = vand.u32 2147483647, %v720
          %v725 = vand.u32 2147483647, %v721
          %v726 = vand.u32 2147483647, %v722
          %v727 = vand.u32 2147483647, %v723
          %v728 = vmin.f32 %v697, %v724
          %v729 = vmin.f32 %v698, %v725
          %v730 = vmin.f32 %v699, %v726
          %v731 = vmin.f32 %v700, %v727
          %v732 = vadd.f32 %v205, 18.0
          %v733 = vadd.f32 %v206, 18.0
          %v734 = vadd.f32 %v207, 18.0
          %v735 = vadd.f32 %v208, 18.0
          %736 = vrot.lane.b32.xlu0 %v178, 109
          %v737 = vpop.permute.xlu0 %736
          %738 = vrot.lane.b32.xlu0 %v179, 109
          %v739 = vpop.permute.xlu0 %738
          %740 = vrot.lane.b32.xlu0 %v180, 109
          %v741 = vpop.permute.xlu0 %740
          %742 = vrot.lane.b32.xlu0 %v181, 109
          %v743 = vpop.permute.xlu0 %742
          %vm744 = vcmask 891904
          %v745 = vsel %vm744, %v737, %v739
          %v746 = vsel %vm744, %v741, %v743
          %v751 = vsub.f32 %v732, %v745
          %v752 = vsub.f32 %v733, %v739
          %v753 = vsub.f32 %v734, %v746
          %v754 = vsub.f32 %v735, %v743
          %v755 = vand.u32 2147483647, %v751
          %v756 = vand.u32 2147483647, %v752
          %v757 = vand.u32 2147483647, %v753
          %v758 = vand.u32 2147483647, %v754
          %v759 = vmin.f32 %v728, %v755
          %v760 = vmin.f32 %v729, %v756
          %v761 = vmin.f32 %v730, %v757
          %v762 = vmin.f32 %v731, %v758
          %v763 = vadd.f32 %v205, 19.0
          %v764 = vadd.f32 %v206, 19.0
          %v765 = vadd.f32 %v207, 19.0
          %v766 = vadd.f32 %v208, 19.0
          %767 = vrot.lane.b32.xlu0 %v178, 108
          %v768 = vpop.permute.xlu0 %767
          %769 = vrot.lane.b32.xlu0 %v179, 108
          %v770 = vpop.permute.xlu0 %769
          %771 = vrot.lane.b32.xlu0 %v180, 108
          %v772 = vpop.permute.xlu0 %771
          %773 = vrot.lane.b32.xlu0 %v181, 108
          %v774 = vpop.permute.xlu0 %773
          %vm775 = vcmask 883712
          %v776 = vsel %vm775, %v768, %v770
          %v777 = vsel %vm775, %v772, %v774
          %v782 = vsub.f32 %v763, %v776
          %v783 = vsub.f32 %v764, %v770
          %v784 = vsub.f32 %v765, %v777
          %v785 = vsub.f32 %v766, %v774
          %v786 = vand.u32 2147483647, %v782
          %v787 = vand.u32 2147483647, %v783
          %v788 = vand.u32 2147483647, %v784
          %v789 = vand.u32 2147483647, %v785
          %v790 = vmin.f32 %v759, %v786
          %v791 = vmin.f32 %v760, %v787
          %v792 = vmin.f32 %v761, %v788
          %v793 = vmin.f32 %v762, %v789
          %v794 = vadd.f32 %v205, 20.0
          %v795 = vadd.f32 %v206, 20.0
          %v796 = vadd.f32 %v207, 20.0
          %v797 = vadd.f32 %v208, 20.0
          %798 = vrot.lane.b32.xlu0 %v178, 107
          %v799 = vpop.permute.xlu0 %798
          %800 = vrot.lane.b32.xlu0 %v179, 107
          %v801 = vpop.permute.xlu0 %800
          %802 = vrot.lane.b32.xlu0 %v180, 107
          %v803 = vpop.permute.xlu0 %802
          %804 = vrot.lane.b32.xlu0 %v181, 107
          %v805 = vpop.permute.xlu0 %804
          %vm806 = vcmask 875520
          %v807 = vsel %vm806, %v799, %v801
          %v808 = vsel %vm806, %v803, %v805
          %v813 = vsub.f32 %v794, %v807
          %v814 = vsub.f32 %v795, %v801
          %v815 = vsub.f32 %v796, %v808
          %v816 = vsub.f32 %v797, %v805
          %v817 = vand.u32 2147483647, %v813
          %v818 = vand.u32 2147483647, %v814
          %v819 = vand.u32 2147483647, %v815
          %v820 = vand.u32 2147483647, %v816
          %v821 = vmin.f32 %v790, %v817
          %v822 = vmin.f32 %v791, %v818
          %v823 = vmin.f32 %v792, %v819
          %v824 = vmin.f32 %v793, %v820
          %v825 = vadd.f32 %v205, 21.0
          %v826 = vadd.f32 %v206, 21.0
          %v827 = vadd.f32 %v207, 21.0
          %v828 = vadd.f32 %v208, 21.0
          %829 = vrot.lane.b32.xlu0 %v178, 106
          %v830 = vpop.permute.xlu0 %829
          %831 = vrot.lane.b32.xlu0 %v179, 106
          %v832 = vpop.permute.xlu0 %831
          %833 = vrot.lane.b32.xlu0 %v180, 106
          %v834 = vpop.permute.xlu0 %833
          %835 = vrot.lane.b32.xlu0 %v181, 106
          %v836 = vpop.permute.xlu0 %835
          %vm837 = vcmask 867328
          %v838 = vsel %vm837, %v830, %v832
          %v839 = vsel %vm837, %v834, %v836
          %v844 = vsub.f32 %v825, %v838
          %v845 = vsub.f32 %v826, %v832
          %v846 = vsub.f32 %v827, %v839
          %v847 = vsub.f32 %v828, %v836
          %v848 = vand.u32 2147483647, %v844
          %v849 = vand.u32 2147483647, %v845
          %v850 = vand.u32 2147483647, %v846
          %v851 = vand.u32 2147483647, %v847
          %v852 = vmin.f32 %v821, %v848
          %v853 = vmin.f32 %v822, %v849
          %v854 = vmin.f32 %v823, %v850
          %v855 = vmin.f32 %v824, %v851
          %v856 = vmin.f32 %v852, 1.0
          %v857 = vmin.f32 %v853, 1.0
          %v858 = vmin.f32 %v854, 1.0
          %v859 = vmin.f32 %v855, 1.0
          %864 = vrot.lane.b32.xlu0 %v856, 106
          %v865 = vpop.permute.xlu0 %864
          %866 = vrot.lane.b32.xlu0 %v857, 106
          %v867 = vpop.permute.xlu0 %866
          %868 = vrot.lane.b32.xlu0 %v858, 106
          %v869 = vpop.permute.xlu0 %868
          %870 = vrot.lane.b32.xlu0 %v859, 106
          %v871 = vpop.permute.xlu0 %870
          %v872 = vsel %vm837, %v865, %v867
          %v873 = vsel %vm837, %v869, %v871
          %876 = vst [vmem:[%s164] sm:$0xff] %v872
          %877 = vst [vmem:[%s164 + $0x8] sm:$0xff] %v873
        $region36: #{tpu_custom_call.1} parent=23 // pred_fallthru
          _
        %p878 = scmp.gt.s32.totalorder %s167, 0
        // Predicated region
        $region37: #{tpu_custom_call.1} parent=23 // pred_check
          %p879 = pneg %p878
        $region38: #{tpu_custom_call.1} parent=23 // pred_check_branch
          %881 = sbr.rel (%p879) target = $region40
        $region39: #{tpu_custom_call.1} parent=23 // pred_region
          %v882 = vld [vmem:[%s145] sm:$0xff]
          %v883 = vld [vmem:[%s145 + $0x8] sm:$0xff]
          %v884 = vld [vmem:[%s145 + $0x10] sm:$0xff]
          %v885 = vld [vmem:[%s145 + $0x18] sm:$0xff]
          %890 = vrot.lane.b32.xlu0 %v882, 1
          %v891 = vpop.permute.xlu0 %890
          %892 = vrot.lane.b32.xlu0 %v883, 1
          %v893 = vpop.permute.xlu0 %892
          %894 = vrot.lane.b32.xlu0 %v884, 1
          %v895 = vpop.permute.xlu0 %894
          %896 = vrot.lane.b32.xlu0 %v885, 1
          %v897 = vpop.permute.xlu0 %896
          %vm898 = vcmask 7168
          %v899 = vsel %vm898, %v891, %v893
          %v900 = vsel %vm898, %v895, %v897
          %v905 = vadd.f32 %v882, %v891
          %v906 = vadd.f32 %v883, %v899
          %v907 = vadd.f32 %v884, %v895
          %v908 = vadd.f32 %v885, %v900
          %v909 = vmul.f32 %v905, 0.5
          %v910 = vmul.f32 %v906, 0.5
          %v911 = vmul.f32 %v907, 0.5
          %v912 = vmul.f32 %v908, 0.5
          %v913 = vadd.f32 %v909, 1.0
          %v914 = vadd.f32 %v910, 1.0
          %v915 = vadd.f32 %v911, 1.0
          %v916 = vadd.f32 %v912, 1.0
          %917 = vrot.lane.b32.xlu0 %v882, 2
          %v918 = vpop.permute.xlu0 %917
          %919 = vrot.lane.b32.xlu0 %v883, 2
          %v920 = vpop.permute.xlu0 %919
          %921 = vrot.lane.b32.xlu0 %v884, 2
          %v922 = vpop.permute.xlu0 %921
          %923 = vrot.lane.b32.xlu0 %v885, 2
          %v924 = vpop.permute.xlu0 %923
          %vm925 = vcmask 15360
          %v926 = vsel %vm925, %v918, %v920
          %v927 = vsel %vm925, %v922, %v924
          %v932 = vsub.f32 %v913, %v918
          %v933 = vsub.f32 %v914, %v926
          %v934 = vsub.f32 %v915, %v922
          %v935 = vsub.f32 %v916, %v927
          %v936 = vand.u32 2147483647, %v932
          %v937 = vand.u32 2147483647, %v933
          %v938 = vand.u32 2147483647, %v934
          %v939 = vand.u32 2147483647, %v935
          %v940 = vadd.f32 %v909, 2.0
          %v941 = vadd.f32 %v910, 2.0
          %v942 = vadd.f32 %v911, 2.0
          %v943 = vadd.f32 %v912, 2.0
          %944 = vrot.lane.b32.xlu0 %v882, 3
          %v945 = vpop.permute.xlu0 %944
          %946 = vrot.lane.b32.xlu0 %v883, 3
          %v947 = vpop.permute.xlu0 %946
          %948 = vrot.lane.b32.xlu0 %v884, 3
          %v949 = vpop.permute.xlu0 %948
          %950 = vrot.lane.b32.xlu0 %v885, 3
          %v951 = vpop.permute.xlu0 %950
          %vm952 = vcmask 23552
          %v953 = vsel %vm952, %v945, %v947
          %v954 = vsel %vm952, %v949, %v951
          %v959 = vsub.f32 %v940, %v945
          %v960 = vsub.f32 %v941, %v953
          %v961 = vsub.f32 %v942, %v949
          %v962 = vsub.f32 %v943, %v954
          %v963 = vand.u32 2147483647, %v959
          %v964 = vand.u32 2147483647, %v960
          %v965 = vand.u32 2147483647, %v961
          %v966 = vand.u32 2147483647, %v962
          %v967 = vmin.f32 %v936, %v963
          %v968 = vmin.f32 %v937, %v964
          %v969 = vmin.f32 %v938, %v965
          %v970 = vmin.f32 %v939, %v966
          %v971 = vadd.f32 %v909, 3.0
          %v972 = vadd.f32 %v910, 3.0
          %v973 = vadd.f32 %v911, 3.0
          %v974 = vadd.f32 %v912, 3.0
          %975 = vrot.lane.b32.xlu0 %v882, 4
          %v976 = vpop.permute.xlu0 %975
          %977 = vrot.lane.b32.xlu0 %v883, 4
          %v978 = vpop.permute.xlu0 %977
          %979 = vrot.lane.b32.xlu0 %v884, 4
          %v980 = vpop.permute.xlu0 %979
          %981 = vrot.lane.b32.xlu0 %v885, 4
          %v982 = vpop.permute.xlu0 %981
          %vm983 = vcmask 31744
          %v984 = vsel %vm983, %v976, %v978
          %v985 = vsel %vm983, %v980, %v982
          %v990 = vsub.f32 %v971, %v976
          %v991 = vsub.f32 %v972, %v984
          %v992 = vsub.f32 %v973, %v980
          %v993 = vsub.f32 %v974, %v985
          %v994 = vand.u32 2147483647, %v990
          %v995 = vand.u32 2147483647, %v991
          %v996 = vand.u32 2147483647, %v992
          %v997 = vand.u32 2147483647, %v993
          %v998 = vmin.f32 %v967, %v994
          %v999 = vmin.f32 %v968, %v995
          %v1000 = vmin.f32 %v969, %v996
          %v1001 = vmin.f32 %v970, %v997
          %v1002 = vadd.f32 %v909, 4.0
          %v1003 = vadd.f32 %v910, 4.0
          %v1004 = vadd.f32 %v911, 4.0
          %v1005 = vadd.f32 %v912, 4.0
          %1006 = vrot.lane.b32.xlu0 %v882, 5
          %v1007 = vpop.permute.xlu0 %1006
          %1008 = vrot.lane.b32.xlu0 %v883, 5
          %v1009 = vpop.permute.xlu0 %1008
          %1010 = vrot.lane.b32.xlu0 %v884, 5
          %v1011 = vpop.permute.xlu0 %1010
          %1012 = vrot.lane.b32.xlu0 %v885, 5
          %v1013 = vpop.permute.xlu0 %1012
          %vm1014 = vcmask 39936
          %v1015 = vsel %vm1014, %v1007, %v1009
          %v1016 = vsel %vm1014, %v1011, %v1013
          %v1021 = vsub.f32 %v1002, %v1007
          %v1022 = vsub.f32 %v1003, %v1015
          %v1023 = vsub.f32 %v1004, %v1011
          %v1024 = vsub.f32 %v1005, %v1016
          %v1025 = vand.u32 2147483647, %v1021
          %v1026 = vand.u32 2147483647, %v1022
          %v1027 = vand.u32 2147483647, %v1023
          %v1028 = vand.u32 2147483647, %v1024
          %v1029 = vmin.f32 %v998, %v1025
          %v1030 = vmin.f32 %v999, %v1026
          %v1031 = vmin.f32 %v1000, %v1027
          %v1032 = vmin.f32 %v1001, %v1028
          %v1033 = vadd.f32 %v909, 5.0
          %v1034 = vadd.f32 %v910, 5.0
          %v1035 = vadd.f32 %v911, 5.0
          %v1036 = vadd.f32 %v912, 5.0
          %1037 = vrot.lane.b32.xlu0 %v882, 6
          %v1038 = vpop.permute.xlu0 %1037
          %1039 = vrot.lane.b32.xlu0 %v883, 6
          %v1040 = vpop.permute.xlu0 %1039
          %1041 = vrot.lane.b32.xlu0 %v884, 6
          %v1042 = vpop.permute.xlu0 %1041
          %1043 = vrot.lane.b32.xlu0 %v885, 6
          %v1044 = vpop.permute.xlu0 %1043
          %vm1045 = vcmask 48128
          %v1046 = vsel %vm1045, %v1038, %v1040
          %v1047 = vsel %vm1045, %v1042, %v1044
          %v1052 = vsub.f32 %v1033, %v1038
          %v1053 = vsub.f32 %v1034, %v1046
          %v1054 = vsub.f32 %v1035, %v1042
          %v1055 = vsub.f32 %v1036, %v1047
          %v1056 = vand.u32 2147483647, %v1052
          %v1057 = vand.u32 2147483647, %v1053
          %v1058 = vand.u32 2147483647, %v1054
          %v1059 = vand.u32 2147483647, %v1055
          %v1060 = vmin.f32 %v1029, %v1056
          %v1061 = vmin.f32 %v1030, %v1057
          %v1062 = vmin.f32 %v1031, %v1058
          %v1063 = vmin.f32 %v1032, %v1059
          %v1064 = vadd.f32 %v909, 6.0
          %v1065 = vadd.f32 %v910, 6.0
          %v1066 = vadd.f32 %v911, 6.0
          %v1067 = vadd.f32 %v912, 6.0
          %1068 = vrot.lane.b32.xlu0 %v882, 7
          %v1069 = vpop.permute.xlu0 %1068
          %1070 = vrot.lane.b32.xlu0 %v883, 7
          %v1071 = vpop.permute.xlu0 %1070
          %1072 = vrot.lane.b32.xlu0 %v884, 7
          %v1073 = vpop.permute.xlu0 %1072
          %1074 = vrot.lane.b32.xlu0 %v885, 7
          %v1075 = vpop.permute.xlu0 %1074
          %vm1076 = vcmask 56320
          %v1077 = vsel %vm1076, %v1069, %v1071
          %v1078 = vsel %vm1076, %v1073, %v1075
          %v1083 = vsub.f32 %v1064, %v1069
          %v1084 = vsub.f32 %v1065, %v1077
          %v1085 = vsub.f32 %v1066, %v1073
          %v1086 = vsub.f32 %v1067, %v1078
          %v1087 = vand.u32 2147483647, %v1083
          %v1088 = vand.u32 2147483647, %v1084
          %v1089 = vand.u32 2147483647, %v1085
          %v1090 = vand.u32 2147483647, %v1086
          %v1091 = vmin.f32 %v1060, %v1087
          %v1092 = vmin.f32 %v1061, %v1088
          %v1093 = vmin.f32 %v1062, %v1089
          %v1094 = vmin.f32 %v1063, %v1090
          %v1095 = vadd.f32 %v909, 7.0
          %v1096 = vadd.f32 %v910, 7.0
          %v1097 = vadd.f32 %v911, 7.0
          %v1098 = vadd.f32 %v912, 7.0
          %1099 = vrot.lane.b32.xlu0 %v882, 8
          %v1100 = vpop.permute.xlu0 %1099
          %1101 = vrot.lane.b32.xlu0 %v883, 8
          %v1102 = vpop.permute.xlu0 %1101
          %1103 = vrot.lane.b32.xlu0 %v884, 8
          %v1104 = vpop.permute.xlu0 %1103
          %1105 = vrot.lane.b32.xlu0 %v885, 8
          %v1106 = vpop.permute.xlu0 %1105
          %vm1107 = vcmask 64512
          %v1108 = vsel %vm1107, %v1100, %v1102
          %v1109 = vsel %vm1107, %v1104, %v1106
          %v1114 = vsub.f32 %v1095, %v1100
          %v1115 = vsub.f32 %v1096, %v1108
          %v1116 = vsub.f32 %v1097, %v1104
          %v1117 = vsub.f32 %v1098, %v1109
          %v1118 = vand.u32 2147483647, %v1114
          %v1119 = vand.u32 2147483647, %v1115
          %v1120 = vand.u32 2147483647, %v1116
          %v1121 = vand.u32 2147483647, %v1117
          %v1122 = vmin.f32 %v1091, %v1118
          %v1123 = vmin.f32 %v1092, %v1119
          %v1124 = vmin.f32 %v1093, %v1120
          %v1125 = vmin.f32 %v1094, %v1121
          %v1126 = vadd.f32 %v909, 8.0
          %v1127 = vadd.f32 %v910, 8.0
          %v1128 = vadd.f32 %v911, 8.0
          %v1129 = vadd.f32 %v912, 8.0
          %1130 = vrot.lane.b32.xlu0 %v882, 9
          %v1131 = vpop.permute.xlu0 %1130
          %1132 = vrot.lane.b32.xlu0 %v883, 9
          %v1133 = vpop.permute.xlu0 %1132
          %1134 = vrot.lane.b32.xlu0 %v884, 9
          %v1135 = vpop.permute.xlu0 %1134
          %1136 = vrot.lane.b32.xlu0 %v885, 9
          %v1137 = vpop.permute.xlu0 %1136
          %vm1138 = vcmask 72704
          %v1139 = vsel %vm1138, %v1131, %v1133
          %v1140 = vsel %vm1138, %v1135, %v1137
          %v1145 = vsub.f32 %v1126, %v1131
          %v1146 = vsub.f32 %v1127, %v1139
          %v1147 = vsub.f32 %v1128, %v1135
          %v1148 = vsub.f32 %v1129, %v1140
          %v1149 = vand.u32 2147483647, %v1145
          %v1150 = vand.u32 2147483647, %v1146
          %v1151 = vand.u32 2147483647, %v1147
          %v1152 = vand.u32 2147483647, %v1148
          %v1153 = vmin.f32 %v1122, %v1149
          %v1154 = vmin.f32 %v1123, %v1150
          %v1155 = vmin.f32 %v1124, %v1151
          %v1156 = vmin.f32 %v1125, %v1152
          %v1157 = vadd.f32 %v909, 9.0
          %v1158 = vadd.f32 %v910, 9.0
          %v1159 = vadd.f32 %v911, 9.0
          %v1160 = vadd.f32 %v912, 9.0
          %1161 = vrot.lane.b32.xlu0 %v882, 10
          %v1162 = vpop.permute.xlu0 %1161
          %1163 = vrot.lane.b32.xlu0 %v883, 10
          %v1164 = vpop.permute.xlu0 %1163
          %1165 = vrot.lane.b32.xlu0 %v884, 10
          %v1166 = vpop.permute.xlu0 %1165
          %1167 = vrot.lane.b32.xlu0 %v885, 10
          %v1168 = vpop.permute.xlu0 %1167
          %vm1169 = vcmask 80896
          %v1170 = vsel %vm1169, %v1162, %v1164
          %v1171 = vsel %vm1169, %v1166, %v1168
          %v1176 = vsub.f32 %v1157, %v1162
          %v1177 = vsub.f32 %v1158, %v1170
          %v1178 = vsub.f32 %v1159, %v1166
          %v1179 = vsub.f32 %v1160, %v1171
          %v1180 = vand.u32 2147483647, %v1176
          %v1181 = vand.u32 2147483647, %v1177
          %v1182 = vand.u32 2147483647, %v1178
          %v1183 = vand.u32 2147483647, %v1179
          %v1184 = vmin.f32 %v1153, %v1180
          %v1185 = vmin.f32 %v1154, %v1181
          %v1186 = vmin.f32 %v1155, %v1182
          %v1187 = vmin.f32 %v1156, %v1183
          %v1188 = vadd.f32 %v909, 10.0
          %v1189 = vadd.f32 %v910, 10.0
          %v1190 = vadd.f32 %v911, 10.0
          %v1191 = vadd.f32 %v912, 10.0
          %1192 = vrot.lane.b32.xlu0 %v882, 11
          %v1193 = vpop.permute.xlu0 %1192
          %1194 = vrot.lane.b32.xlu0 %v883, 11
          %v1195 = vpop.permute.xlu0 %1194
          %1196 = vrot.lane.b32.xlu0 %v884, 11
          %v1197 = vpop.permute.xlu0 %1196
          %1198 = vrot.lane.b32.xlu0 %v885, 11
          %v1199 = vpop.permute.xlu0 %1198
          %vm1200 = vcmask 89088
          %v1201 = vsel %vm1200, %v1193, %v1195
          %v1202 = vsel %vm1200, %v1197, %v1199
          %v1207 = vsub.f32 %v1188, %v1193
          %v1208 = vsub.f32 %v1189, %v1201
          %v1209 = vsub.f32 %v1190, %v1197
          %v1210 = vsub.f32 %v1191, %v1202
          %v1211 = vand.u32 2147483647, %v1207
          %v1212 = vand.u32 2147483647, %v1208
          %v1213 = vand.u32 2147483647, %v1209
          %v1214 = vand.u32 2147483647, %v1210
          %v1215 = vmin.f32 %v1184, %v1211
          %v1216 = vmin.f32 %v1185, %v1212
          %v1217 = vmin.f32 %v1186, %v1213
          %v1218 = vmin.f32 %v1187, %v1214
          %v1219 = vadd.f32 %v909, 11.0
          %v1220 = vadd.f32 %v910, 11.0
          %v1221 = vadd.f32 %v911, 11.0
          %v1222 = vadd.f32 %v912, 11.0
          %1223 = vrot.lane.b32.xlu0 %v882, 12
          %v1224 = vpop.permute.xlu0 %1223
          %1225 = vrot.lane.b32.xlu0 %v883, 12
          %v1226 = vpop.permute.xlu0 %1225
          %1227 = vrot.lane.b32.xlu0 %v884, 12
          %v1228 = vpop.permute.xlu0 %1227
          %1229 = vrot.lane.b32.xlu0 %v885, 12
          %v1230 = vpop.permute.xlu0 %1229
          %vm1231 = vcmask 97280
          %v1232 = vsel %vm1231, %v1224, %v1226
          %v1233 = vsel %vm1231, %v1228, %v1230
          %v1238 = vsub.f32 %v1219, %v1224
          %v1239 = vsub.f32 %v1220, %v1232
          %v1240 = vsub.f32 %v1221, %v1228
          %v1241 = vsub.f32 %v1222, %v1233
          %v1242 = vand.u32 2147483647, %v1238
          %v1243 = vand.u32 2147483647, %v1239
          %v1244 = vand.u32 2147483647, %v1240
          %v1245 = vand.u32 2147483647, %v1241
          %v1246 = vmin.f32 %v1215, %v1242
          %v1247 = vmin.f32 %v1216, %v1243
          %v1248 = vmin.f32 %v1217, %v1244
          %v1249 = vmin.f32 %v1218, %v1245
          %v1250 = vadd.f32 %v909, 12.0
          %v1251 = vadd.f32 %v910, 12.0
          %v1252 = vadd.f32 %v911, 12.0
          %v1253 = vadd.f32 %v912, 12.0
          %1254 = vrot.lane.b32.xlu0 %v882, 13
          %v1255 = vpop.permute.xlu0 %1254
          %1256 = vrot.lane.b32.xlu0 %v883, 13
          %v1257 = vpop.permute.xlu0 %1256
          %1258 = vrot.lane.b32.xlu0 %v884, 13
          %v1259 = vpop.permute.xlu0 %1258
          %1260 = vrot.lane.b32.xlu0 %v885, 13
          %v1261 = vpop.permute.xlu0 %1260
          %vm1262 = vcmask 105472
          %v1263 = vsel %vm1262, %v1255, %v1257
          %v1264 = vsel %vm1262, %v1259, %v1261
          %v1269 = vsub.f32 %v1250, %v1255
          %v1270 = vsub.f32 %v1251, %v1263
          %v1271 = vsub.f32 %v1252, %v1259
          %v1272 = vsub.f32 %v1253, %v1264
          %v1273 = vand.u32 2147483647, %v1269
          %v1274 = vand.u32 2147483647, %v1270
          %v1275 = vand.u32 2147483647, %v1271
          %v1276 = vand.u32 2147483647, %v1272
          %v1277 = vmin.f32 %v1246, %v1273
          %v1278 = vmin.f32 %v1247, %v1274
          %v1279 = vmin.f32 %v1248, %v1275
          %v1280 = vmin.f32 %v1249, %v1276
          %v1281 = vadd.f32 %v909, 13.0
          %v1282 = vadd.f32 %v910, 13.0
          %v1283 = vadd.f32 %v911, 13.0
          %v1284 = vadd.f32 %v912, 13.0
          %1285 = vrot.lane.b32.xlu0 %v882, 14
          %v1286 = vpop.permute.xlu0 %1285
          %1287 = vrot.lane.b32.xlu0 %v883, 14
          %v1288 = vpop.permute.xlu0 %1287
          %1289 = vrot.lane.b32.xlu0 %v884, 14
          %v1290 = vpop.permute.xlu0 %1289
          %1291 = vrot.lane.b32.xlu0 %v885, 14
          %v1292 = vpop.permute.xlu0 %1291
          %vm1293 = vcmask 113664
          %v1294 = vsel %vm1293, %v1286, %v1288
          %v1295 = vsel %vm1293, %v1290, %v1292
          %v1300 = vsub.f32 %v1281, %v1286
          %v1301 = vsub.f32 %v1282, %v1294
          %v1302 = vsub.f32 %v1283, %v1290
          %v1303 = vsub.f32 %v1284, %v1295
          %v1304 = vand.u32 2147483647, %v1300
          %v1305 = vand.u32 2147483647, %v1301
          %v1306 = vand.u32 2147483647, %v1302
          %v1307 = vand.u32 2147483647, %v1303
          %v1308 = vmin.f32 %v1277, %v1304
          %v1309 = vmin.f32 %v1278, %v1305
          %v1310 = vmin.f32 %v1279, %v1306
          %v1311 = vmin.f32 %v1280, %v1307
          %v1312 = vadd.f32 %v909, 14.0
          %v1313 = vadd.f32 %v910, 14.0
          %v1314 = vadd.f32 %v911, 14.0
          %v1315 = vadd.f32 %v912, 14.0
          %1316 = vrot.lane.b32.xlu0 %v882, 15
          %v1317 = vpop.permute.xlu0 %1316
          %1318 = vrot.lane.b32.xlu0 %v883, 15
          %v1319 = vpop.permute.xlu0 %1318
          %1320 = vrot.lane.b32.xlu0 %v884, 15
          %v1321 = vpop.permute.xlu0 %1320
          %1322 = vrot.lane.b32.xlu0 %v885, 15
          %v1323 = vpop.permute.xlu0 %1322
          %vm1324 = vcmask 121856
          %v1325 = vsel %vm1324, %v1317, %v1319
          %v1326 = vsel %vm1324, %v1321, %v1323
          %v1331 = vsub.f32 %v1312, %v1317
          %v1332 = vsub.f32 %v1313, %v1325
          %v1333 = vsub.f32 %v1314, %v1321
          %v1334 = vsub.f32 %v1315, %v1326
          %v1335 = vand.u32 2147483647, %v1331
          %v1336 = vand.u32 2147483647, %v1332
          %v1337 = vand.u32 2147483647, %v1333
          %v1338 = vand.u32 2147483647, %v1334
          %v1339 = vmin.f32 %v1308, %v1335
          %v1340 = vmin.f32 %v1309, %v1336
          %v1341 = vmin.f32 %v1310, %v1337
          %v1342 = vmin.f32 %v1311, %v1338
          %v1343 = vadd.f32 %v909, 15.0
          %v1344 = vadd.f32 %v910, 15.0
          %v1345 = vadd.f32 %v911, 15.0
          %v1346 = vadd.f32 %v912, 15.0
          %1347 = vrot.lane.b32.xlu0 %v882, 16
          %v1348 = vpop.permute.xlu0 %1347
          %1349 = vrot.lane.b32.xlu0 %v883, 16
          %v1350 = vpop.permute.xlu0 %1349
          %1351 = vrot.lane.b32.xlu0 %v884, 16
          %v1352 = vpop.permute.xlu0 %1351
          %1353 = vrot.lane.b32.xlu0 %v885, 16
          %v1354 = vpop.permute.xlu0 %1353
          %vm1355 = vcmask 130048
          %v1356 = vsel %vm1355, %v1348, %v1350
          %v1357 = vsel %vm1355, %v1352, %v1354
          %v1362 = vsub.f32 %v1343, %v1348
          %v1363 = vsub.f32 %v1344, %v1356
          %v1364 = vsub.f32 %v1345, %v1352
          %v1365 = vsub.f32 %v1346, %v1357
          %v1366 = vand.u32 2147483647, %v1362
          %v1367 = vand.u32 2147483647, %v1363
          %v1368 = vand.u32 2147483647, %v1364
          %v1369 = vand.u32 2147483647, %v1365
          %v1370 = vmin.f32 %v1339, %v1366
          %v1371 = vmin.f32 %v1340, %v1367
          %v1372 = vmin.f32 %v1341, %v1368
          %v1373 = vmin.f32 %v1342, %v1369
          %v1374 = vadd.f32 %v909, 16.0
          %v1375 = vadd.f32 %v910, 16.0
          %v1376 = vadd.f32 %v911, 16.0
          %v1377 = vadd.f32 %v912, 16.0
          %1378 = vrot.lane.b32.xlu0 %v882, 17
          %v1379 = vpop.permute.xlu0 %1378
          %1380 = vrot.lane.b32.xlu0 %v883, 17
          %v1381 = vpop.permute.xlu0 %1380
          %1382 = vrot.lane.b32.xlu0 %v884, 17
          %v1383 = vpop.permute.xlu0 %1382
          %1384 = vrot.lane.b32.xlu0 %v885, 17
          %v1385 = vpop.permute.xlu0 %1384
          %vm1386 = vcmask 138240
          %v1387 = vsel %vm1386, %v1379, %v1381
          %v1388 = vsel %vm1386, %v1383, %v1385
          %v1393 = vsub.f32 %v1374, %v1379
          %v1394 = vsub.f32 %v1375, %v1387
          %v1395 = vsub.f32 %v1376, %v1383
          %v1396 = vsub.f32 %v1377, %v1388
          %v1397 = vand.u32 2147483647, %v1393
          %v1398 = vand.u32 2147483647, %v1394
          %v1399 = vand.u32 2147483647, %v1395
          %v1400 = vand.u32 2147483647, %v1396
          %v1401 = vmin.f32 %v1370, %v1397
          %v1402 = vmin.f32 %v1371, %v1398
          %v1403 = vmin.f32 %v1372, %v1399
          %v1404 = vmin.f32 %v1373, %v1400
          %v1405 = vadd.f32 %v909, 17.0
          %v1406 = vadd.f32 %v910, 17.0
          %v1407 = vadd.f32 %v911, 17.0
          %v1408 = vadd.f32 %v912, 17.0
          %1409 = vrot.lane.b32.xlu0 %v882, 18
          %v1410 = vpop.permute.xlu0 %1409
          %1411 = vrot.lane.b32.xlu0 %v883, 18
          %v1412 = vpop.permute.xlu0 %1411
          %1413 = vrot.lane.b32.xlu0 %v884, 18
          %v1414 = vpop.permute.xlu0 %1413
          %1415 = vrot.lane.b32.xlu0 %v885, 18
          %v1416 = vpop.permute.xlu0 %1415
          %vm1417 = vcmask 146432
          %v1418 = vsel %vm1417, %v1410, %v1412
          %v1419 = vsel %vm1417, %v1414, %v1416
          %v1424 = vsub.f32 %v1405, %v1410
          %v1425 = vsub.f32 %v1406, %v1418
          %v1426 = vsub.f32 %v1407, %v1414
          %v1427 = vsub.f32 %v1408, %v1419
          %v1428 = vand.u32 2147483647, %v1424
          %v1429 = vand.u32 2147483647, %v1425
          %v1430 = vand.u32 2147483647, %v1426
          %v1431 = vand.u32 2147483647, %v1427
          %v1432 = vmin.f32 %v1401, %v1428
          %v1433 = vmin.f32 %v1402, %v1429
          %v1434 = vmin.f32 %v1403, %v1430
          %v1435 = vmin.f32 %v1404, %v1431
          %v1436 = vadd.f32 %v909, 18.0
          %v1437 = vadd.f32 %v910, 18.0
          %v1438 = vadd.f32 %v911, 18.0
          %v1439 = vadd.f32 %v912, 18.0
          %1440 = vrot.lane.b32.xlu0 %v882, 19
          %v1441 = vpop.permute.xlu0 %1440
          %1442 = vrot.lane.b32.xlu0 %v883, 19
          %v1443 = vpop.permute.xlu0 %1442
          %1444 = vrot.lane.b32.xlu0 %v884, 19
          %v1445 = vpop.permute.xlu0 %1444
          %1446 = vrot.lane.b32.xlu0 %v885, 19
          %v1447 = vpop.permute.xlu0 %1446
          %vm1448 = vcmask 154624
          %v1449 = vsel %vm1448, %v1441, %v1443
          %v1450 = vsel %vm1448, %v1445, %v1447
          %v1455 = vsub.f32 %v1436, %v1441
          %v1456 = vsub.f32 %v1437, %v1449
          %v1457 = vsub.f32 %v1438, %v1445
          %v1458 = vsub.f32 %v1439, %v1450
          %v1459 = vand.u32 2147483647, %v1455
          %v1460 = vand.u32 2147483647, %v1456
          %v1461 = vand.u32 2147483647, %v1457
          %v1462 = vand.u32 2147483647, %v1458
          %v1463 = vmin.f32 %v1432, %v1459
          %v1464 = vmin.f32 %v1433, %v1460
          %v1465 = vmin.f32 %v1434, %v1461
          %v1466 = vmin.f32 %v1435, %v1462
          %v1467 = vadd.f32 %v909, 19.0
          %v1468 = vadd.f32 %v910, 19.0
          %v1469 = vadd.f32 %v911, 19.0
          %v1470 = vadd.f32 %v912, 19.0
          %1471 = vrot.lane.b32.xlu0 %v882, 20
          %v1472 = vpop.permute.xlu0 %1471
          %1473 = vrot.lane.b32.xlu0 %v883, 20
          %v1474 = vpop.permute.xlu0 %1473
          %1475 = vrot.lane.b32.xlu0 %v884, 20
          %v1476 = vpop.permute.xlu0 %1475
          %1477 = vrot.lane.b32.xlu0 %v885, 20
          %v1478 = vpop.permute.xlu0 %1477
          %vm1479 = vcmask 162816
          %v1480 = vsel %vm1479, %v1472, %v1474
          %v1481 = vsel %vm1479, %v1476, %v1478
          %v1486 = vsub.f32 %v1467, %v1472
          %v1487 = vsub.f32 %v1468, %v1480
          %v1488 = vsub.f32 %v1469, %v1476
          %v1489 = vsub.f32 %v1470, %v1481
          %v1490 = vand.u32 2147483647, %v1486
          %v1491 = vand.u32 2147483647, %v1487
          %v1492 = vand.u32 2147483647, %v1488
          %v1493 = vand.u32 2147483647, %v1489
          %v1494 = vmin.f32 %v1463, %v1490
          %v1495 = vmin.f32 %v1464, %v1491
          %v1496 = vmin.f32 %v1465, %v1492
          %v1497 = vmin.f32 %v1466, %v1493
          %v1498 = vadd.f32 %v909, 20.0
          %v1499 = vadd.f32 %v910, 20.0
          %v1500 = vadd.f32 %v911, 20.0
          %v1501 = vadd.f32 %v912, 20.0
          %1502 = vrot.lane.b32.xlu0 %v882, 21
          %v1503 = vpop.permute.xlu0 %1502
          %1504 = vrot.lane.b32.xlu0 %v883, 21
          %v1505 = vpop.permute.xlu0 %1504
          %1506 = vrot.lane.b32.xlu0 %v884, 21
          %v1507 = vpop.permute.xlu0 %1506
          %1508 = vrot.lane.b32.xlu0 %v885, 21
          %v1509 = vpop.permute.xlu0 %1508
          %vm1510 = vcmask 171008
          %v1511 = vsel %vm1510, %v1503, %v1505
          %v1512 = vsel %vm1510, %v1507, %v1509
          %v1517 = vsub.f32 %v1498, %v1503
          %v1518 = vsub.f32 %v1499, %v1511
          %v1519 = vsub.f32 %v1500, %v1507
          %v1520 = vsub.f32 %v1501, %v1512
          %v1521 = vand.u32 2147483647, %v1517
          %v1522 = vand.u32 2147483647, %v1518
          %v1523 = vand.u32 2147483647, %v1519
          %v1524 = vand.u32 2147483647, %v1520
          %v1525 = vmin.f32 %v1494, %v1521
          %v1526 = vmin.f32 %v1495, %v1522
          %v1527 = vmin.f32 %v1496, %v1523
          %v1528 = vmin.f32 %v1497, %v1524
          %v1529 = vld [vmem:[%s145] sm:$0xff]
          %v1530 = vld [vmem:[%s145 + $0x10] sm:$0xff]
          %v1531 = vadd.f32 %v909, 21.0
          %v1532 = vadd.f32 %v910, 21.0
          %v1533 = vadd.f32 %v911, 21.0
          %v1534 = vadd.f32 %v912, 21.0
          %1537 = vrot.lane.b32.xlu0 %v1529, 22
          %v1538 = vpop.permute.xlu0 %1537
          %1539 = vrot.lane.b32.xlu0 %v1530, 22
          %v1540 = vpop.permute.xlu0 %1539
          %v1543 = vsub.f32 %v1531, %v1538
          %v1544 = vsub.f32 %v1532, %v1538
          %v1545 = vsub.f32 %v1533, %v1540
          %v1546 = vsub.f32 %v1534, %v1540
          %v1547 = vand.u32 2147483647, %v1543
          %v1548 = vand.u32 2147483647, %v1544
          %v1549 = vand.u32 2147483647, %v1545
          %v1550 = vand.u32 2147483647, %v1546
          %v1551 = vmin.f32 %v1525, %v1547
          %v1552 = vmin.f32 %v1526, %v1548
          %v1553 = vmin.f32 %v1527, %v1549
          %v1554 = vmin.f32 %v1528, %v1550
          %v1555 = vmin.f32 %v1551, 1.0
          %v1556 = vmin.f32 %v1552, 1.0
          %v1557 = vmin.f32 %v1553, 1.0
          %v1558 = vmin.f32 %v1554, 1.0
          %1563 = vrot.lane.b32.xlu0 %v1555, 106
          %v1564 = vpop.permute.xlu0 %1563
          %1565 = vrot.lane.b32.xlu0 %v1556, 106
          %v1566 = vpop.permute.xlu0 %1565
          %1567 = vrot.lane.b32.xlu0 %v1557, 106
          %v1568 = vpop.permute.xlu0 %1567
          %1569 = vrot.lane.b32.xlu0 %v1558, 106
          %v1570 = vpop.permute.xlu0 %1569
          %vm1571 = vcmask 867328
          %v1572 = vsel %vm1571, %v1564, %v1566
          %v1573 = vsel %vm1571, %v1568, %v1570
          %1576 = vst [vmem:[%s164] sm:$0xff] %v1572
          %1577 = vst [vmem:[%s164 + $0x8] sm:$0xff] %v1573
        $region40: #{tpu_custom_call.1} parent=23 // pred_fallthru
          _
        %s1578 = sand.u32 %s77, 1
        %s1579 = scalar_lea.sflag [#allocation6], %s1578
        %s1580 = sand.u32 %s77, 1
        %s1581 = smul.addr %s1580, 16
        %s1582 = scalar_lea.vmem [#allocation7], %s1581
        // Predicated region
        $region41: #{tpu_custom_call.1} parent=23 // pred_check
          %p1583 = pneg %p87
        $region42: #{tpu_custom_call.1} parent=23 // pred_check_branch
          %1585 = sbr.rel (%p1583) target = $region44
        $region43: #{tpu_custom_call.1} parent=23 // pred_region
          %s1586 = smul.u32 2, %s32
          %1588 = vsyncadd %s1579, 0
          %s1589 = smul.addr %s31, 2
          %s1590 = sadd.s32 %s1586, %s1589
          %s1591 = smul.addr %s1590, 8
          %s1592 = scalar_lea.hbm %s2, %s1591
          %s1593 = sshll.u32 %s1582, 4
          %s1594 = int_to_ptr.vmem [resolvable:$true] %s1593
          %s1595 = sshll.u32 %s1592, 4
          %s1596 = int_to_ptr.hbm [resolvable:$true] %s1595
          %1601 = dma.vmem_to_hbm [thread:$0]  %s1594, 256, %s1596, %s1579, 128, 128, 8
        $region44: #{tpu_custom_call.1} parent=23 // pred_fallthru
          _
      $region24: #{tpu_custom_call.1} parent=5 // pred_fallthru
        _
      %p1602 = scmp.le.s32.totalorder 2, %s22
      // Predicated region
      $region45: #{tpu_custom_call.1} parent=5 // pred_check
        %p1603 = pneg %p1602
      $region46: #{tpu_custom_call.1} parent=5 // pred_check_branch
        %1605 = sbr.rel (%p1603) target = $region48
      $region47: #{tpu_custom_call.1} parent=5 // pred_region
        %s1606 = ssub.s32 %s22, 2
        // Predicated region
        $region49: #{tpu_custom_call.1} parent=47 // pred_check
          %p1607 = pneg %p93
        $region50: #{tpu_custom_call.1} parent=47 // pred_check_branch
          %1609 = sbr.rel (%p1607) target = $region52
        $region51: #{tpu_custom_call.1} parent=47 // pred_region
          %s1610 = sand.u32 %s78, 1
          %s1611 = scalar_lea.sflag [#allocation6], %s1610
          %s1612 = sand.u32 %s78, 1
          %s1613 = smul.addr %s1612, 16
          %s1614 = scalar_lea.vmem [#allocation7], %s1613
          %1616 = dma.done %s1611, 256
        $region52: #{tpu_custom_call.1} parent=47 // pred_fallthru
          _
      $region48: #{tpu_custom_call.1} parent=5 // pred_fallthru
        _
    $region6: #{tpu_custom_call.1} parent=1 // loop_footer
      %s26 = sadd.s32 1, %s22
    $region7: #{tpu_custom_call.1} parent=1 // loop_footer_branch
      %21 = sbr.rel target = $region3
    $region8: #{tpu_custom_call.1} parent=1 // loop_exit
      _
    %1617 = vsyncpa [#allocation5], 1
    %s1618 = scalar_lea.sflag [#allocation5], 1
    %1619 = vsyncpa %s1618, 1
    %1620 = vsyncpa [#allocation6], 1
    %s1621 = scalar_lea.sflag [#allocation6], 1
    %1622 = vsyncpa %s1621, 1

</llo_original>
